<compile_context>
chip_gen: v7x
topology: tpu7x:2x2x1
jax: 0.10.0
libtpu: 0.0.40
codegen_flags: <defaults>
</compile_context>

<pallas_src>
import functools

import jax
import jax.numpy as jnp
from jax.experimental import pallas as pl
from jax.experimental.pallas import tpu as pltpu

_EPS = 1e-5


def _ru(x, m):
    return ((x + m - 1) // m) * m


def _vmem_cap_bytes():
    # Generation-aware scoped-VMEM ceiling: ~60% of physical VMEM
    # (v5e/v6e 128 MiB -> ~77 MiB, v7x 64 MiB -> ~38 MiB). Conservative fallback.
    try:
        phys = int(pltpu.get_tpu_info().vmem_capacity_bytes)
    except Exception:
        phys = 64 * 2 ** 20
    return max(16 * 2 ** 20, int(0.6 * phys))


def _vmem_limit(est_bytes):
    # 2x margin over the static estimate, floor 8 MiB, capped per generation.
    return int(min(max(2 * est_bytes, 8 * 2 ** 20), _vmem_cap_bytes()))


def _edge_accum_kernel(x_ref, h_ref, w_ref,
                       tmp_ref, invde_ref, rdv_ref,
                       acc_ref, de_ref):
    """Pass 1 over node tiles: acc += H^T (Dv^{-1/2} X W), de += H.sum(0)."""
    i = pl.program_id(0)

    @pl.when(i == 0)
    def _():
        acc_ref[...] = jnp.zeros_like(acc_ref)
        de_ref[...] = jnp.zeros_like(de_ref)

    h8 = h_ref[...]                                      # [tN, E] int8 (binary)
    hf = h8.astype(jnp.float32)
    dv = jnp.sum(hf, axis=1, keepdims=True)              # [tN, 1] node degrees
    de_ref[...] += jnp.sum(hf, axis=0, keepdims=True)    # [1, E] edge-degree partials

    rdv = jax.lax.rsqrt(dv + _EPS)                       # Dv^{-1/2}, reused by pass 2
    rdv_ref[...] = rdv

    # X W on the MXU (f32 accumulation), then row-scale by Dv^{-1/2}.
    xw = jnp.dot(x_ref[...], w_ref[...], preferred_element_type=jnp.float32)
    y = (rdv * xw).astype(jnp.bfloat16)                  # [tN, F_out] bf16 MXU operand

    # acc += H^T @ y : contract the node (tile) axis of both operands.
    acc_ref[...] += jax.lax.dot_general(
        h8.astype(jnp.bfloat16), y,
        dimension_numbers=(((0,), (0,)), ((), ())),
        preferred_element_type=jnp.float32)

    @pl.when(i == pl.num_programs(0) - 1)
    def _():
        # EUP reciprocal -> essentially free; bf16 cast of the accumulator here
        # removes the f32 HBM round trip and the XLA glue between passes.
        invde_ref[...] = pl.reciprocal(de_ref[...] + _EPS, approx=True)
        tmp_ref[...] = acc_ref[...].astype(jnp.bfloat16)


def _node_out_kernel(h_ref, t_ref, invde_ref, rdv_ref, b_ref, o_ref):
    """Pass 2 over node tiles: out = Dv^{-1/2} ((H De^{-1}) @ tmp) + bias."""
    # Fold De^{-1} into the H tile columns: [1,E] broadcast over rows is
    # lane-aligned (no transpose anywhere); bf16 multiply is VALU filler under
    # the HBM-bound int8 H stream.
    h = h_ref[...].astype(jnp.bfloat16) * invde_ref[...].astype(jnp.bfloat16)
    acc = jnp.dot(h, t_ref[...], preferred_element_type=jnp.float32)  # [tN, F_out] f32
    o_ref[...] = rdv_ref[...] * acc + b_ref[...]


def hypergraph_conv(X, H, W, bias, *, tile_n=512):
    """X: [N, F_in], H: [N, E] (0/1 incidence), W: [F_in, F_out], bias: [F_out]."""
    N, F_in = X.shape
    E = H.shape[1]
    F_out = W.shape[1]

    # Lane-dense padding (feature / edge dims to multiples of 128).
    F_in_p = _ru(F_in, 128)
    F_out_p = _ru(F_out, 128)
    E_p = _ru(E, 128)

    # Node tiles in multiples of 256 (int8 (32,128) / bf16 (16,128) packing, MXU width).
    tile_n = max(256, _ru(int(tile_n), 256))
    tile_n = min(tile_n, _ru(N, 256))
    N_p = _ru(N, tile_n)
    n_tiles = N_p // tile_n

    # Padded zero rows/cols of H / X contribute nothing (see kernel comments);
    # H is binary so the int8 stream + bf16 MXU operands are exact.
    Xp = jnp.pad(X.astype(jnp.bfloat16), ((0, N_p - N), (0, F_in_p - F_in)))
    Hp = jnp.pad(H.astype(jnp.int8), ((0, N_p - N), (0, E_p - E)))
    Wp = jnp.pad(W.astype(jnp.bfloat16), ((0, F_in_p - F_in), (0, F_out_p - F_out)))
    bp = jnp.pad(bias.astype(jnp.float32), (0, F_out_p - F_out)).reshape(1, F_out_p)

    # ---------------- Pass 1: reduction over node tiles
    est_a = (2 * tile_n * F_in_p * 2            # double-buffered bf16 X tiles
             + 2 * tile_n * E_p * 1             # double-buffered int8 H tiles
             + 2 * F_in_p * F_out_p * 2         # resident W (budget 2 bufs)
             + E_p * F_out_p * 2                # tmp bf16 output
             + 8 * E_p * 4 + 2 * tile_n * 4     # inv_de / rsqrt_dv outputs
             + E_p * F_out_p * 4 + 8 * E_p * 4  # f32 acc + de scratch
             + tile_n * E_p * (4 + 2)           # hf f32 + h bf16 temporaries
             + 3 * tile_n * F_out_p * 4)        # xw / y / dot temporaries
    cost_a = pl.CostEstimate(
        flops=int(2 * N_p * F_out_p * (F_in_p + E_p)),
        transcendentals=int(N_p + E_p),
        bytes_accessed=int(N_p * F_in_p * 2 + N_p * E_p * 1 + F_in_p * F_out_p * 2
                           + E_p * F_out_p * 2 + E_p * 4 + N_p * 4))
    tmp, inv_de, rdv = pl.pallas_call(
        _edge_accum_kernel,
        out_shape=(jax.ShapeDtypeStruct((E_p, F_out_p), jnp.bfloat16),
                   jax.ShapeDtypeStruct((1, E_p), jnp.float32),
                   jax.ShapeDtypeStruct((N_p, 1), jnp.float32)),
        grid_spec=pltpu.PrefetchScalarGridSpec(
            num_scalar_prefetch=0,
            grid=(n_tiles,),
            in_specs=[pl.BlockSpec((tile_n, F_in_p), lambda i: (i, 0)),
                      pl.BlockSpec((tile_n, E_p), lambda i: (i, 0)),
                      pl.BlockSpec((F_in_p, F_out_p), lambda i: (0, 0))],
            out_specs=(pl.BlockSpec((E_p, F_out_p), lambda i: (0, 0)),
                       pl.BlockSpec((1, E_p), lambda i: (0, 0)),
                       pl.BlockSpec((tile_n, 1), lambda i: (i, 0))),
            scratch_shapes=[pltpu.VMEM((E_p, F_out_p), jnp.float32),
                            pltpu.VMEM((1, E_p), jnp.float32)]),
        compiler_params=pltpu.CompilerParams(
            dimension_semantics=("arbitrary",),
            vmem_limit_bytes=_vmem_limit(est_a)),
        cost_estimate=cost_a,
    )(Xp, Hp, Wp)

    # ---------------- Pass 2: parallel over node tiles
    est_b = (2 * tile_n * E_p * 1               # double-buffered int8 H tiles
             + 2 * E_p * F_out_p * 2            # resident bf16 tmp (budget 2 bufs)
             + 2 * 8 * E_p * 4                  # inv_de
             + 2 * tile_n * 4 + 2 * F_out_p * 4 # rsqrt_dv tiles + bias
             + 2 * tile_n * F_out_p * 4         # double-buffered f32 output
             + tile_n * E_p * 2                 # scaled-H bf16 temporary
             + 2 * tile_n * F_out_p * 4)        # acc temporaries
    cost_b = pl.CostEstimate(
        flops=int(2 * N_p * E_p * F_out_p),
        transcendentals=0,
        bytes_accessed=int(N_p * E_p * 1 + E_p * F_out_p * 2 + E_p * 4 + N_p * 4
                           + F_out_p * 4 + N_p * F_out_p * 4))
    out_p = pl.pallas_call(
        _node_out_kernel,
        out_shape=jax.ShapeDtypeStruct((N_p, F_out_p), jnp.float32),
        grid_spec=pltpu.PrefetchScalarGridSpec(
            num_scalar_prefetch=0,
            grid=(n_tiles,),
            in_specs=[pl.BlockSpec((tile_n, E_p), lambda i: (i, 0)),
                      pl.BlockSpec((E_p, F_out_p), lambda i: (0, 0)),
                      pl.BlockSpec((1, E_p), lambda i: (0, 0)),
                      pl.BlockSpec((tile_n, 1), lambda i: (i, 0)),
                      pl.BlockSpec((1, F_out_p), lambda i: (0, 0))],
            out_specs=pl.BlockSpec((tile_n, F_out_p), lambda i: (i, 0))),
        compiler_params=pltpu.CompilerParams(
            dimension_semantics=("parallel",),
            vmem_limit_bytes=_vmem_limit(est_b)),
        cost_estimate=cost_b,
    )(Hp, tmp, inv_de, rdv, bp)

    return out_p[:N, :F_out]


def _reference(X, H, W, bias):
    dv = H.sum(1)
    de = H.sum(0)
    dv_inv_sqrt = 1.0 / jnp.sqrt(dv + _EPS)
    de_inv = 1.0 / (de + _EPS)
    XW = X @ W
    out = (dv_inv_sqrt[:, None] * H) @ (
        de_inv[:, None] * (H.T @ (dv_inv_sqrt[:, None] * XW)))
    return out + bias[None, :]


if __name__ == "__main__":
    key = jax.random.PRNGKey(0)
    k_x, k_h, k_w, k_b = jax.random.split(key, 4)

    # Small shapes; padded to lane-dense / tile-aligned sizes inside the wrapper.
    N, E = 600, 96                        # nodes, hyperedges
    in_features, out_features = 32, 48

    X = jax.random.normal(k_x, (N, in_features), dtype=jnp.float32)
    H = (jax.random.uniform(k_h, (N, E)) > 0.6).astype(jnp.float32)   # dense 0/1 incidence

    bound = (6.0 / (in_features + out_features)) ** 0.5               # xavier-uniform
    W = jax.random.uniform(k_w, (in_features, out_features),
                           minval=-bound, maxval=bound, dtype=jnp.float32)
    bias = 0.1 * jax.random.normal(k_b, (out_features,), dtype=jnp.float32)

    # tile_n=256 so the padded N=768 exercises the 3-tile reduction + finalize path.
    fwd = jax.jit(functools.partial(hypergraph_conv, tile_n=256))
    out = jax.block_until_ready(fwd(X, H, W, bias))

    # Reference in f32 on bf16-rounded inputs (kernel feeds bf16 operands to the MXU).
    Xb = X.astype(jnp.bfloat16).astype(jnp.float32)
    Wb = W.astype(jnp.bfloat16).astype(jnp.float32)
    ref = _reference(Xb, H, Wb, bias)

    assert out.shape == (N, out_features)
    assert jnp.allclose(out, ref, atol=3e-2, rtol=3e-2), "mismatch vs reference"

    print("KERNEL_OK")
</pallas_src>

<mosaic_0001>
module attributes {stable_mosaic.version = 11 : i64} {
  func.func @_edge_accum_kernel(%arg0: i32, %arg1: memref<256x128xbf16, #tpu.memory_space<vmem>>, %arg2: memref<256x128xi8, #tpu.memory_space<vmem>>, %arg3: memref<128x128xbf16, #tpu.memory_space<vmem>>, %arg4: memref<128x128xbf16, #tpu.memory_space<vmem>>, %arg5: memref<1x128xf32, #tpu.memory_space<vmem>>, %arg6: memref<256x1xf32, #tpu.memory_space<vmem>>, %arg7: memref<128x128xf32, #tpu.memory_space<vmem>>, %arg8: memref<1x128xf32, #tpu.memory_space<vmem>>) attributes {dimension_semantics = [#tpu.dimension_semantics<arbitrary>], iteration_bounds = array<i64: 3>, scalar_prefetch = 0 : i64, scratch_operands = 2 : i64, tpu.core_type = #tpu.core_type<tc>, window_params = [{transform_indices = @transform_0, window_bounds = array<i64: 256, 128>}, {transform_indices = @transform_1, window_bounds = array<i64: 256, 128>}, {pipeline_mode = #tpu.pipeline_mode<synchronous>, transform_indices = @transform_2, window_bounds = array<i64: 128, 128>}, {pipeline_mode = #tpu.pipeline_mode<synchronous>, transform_indices = @transform_3, window_bounds = array<i64: 128, 128>}, {pipeline_mode = #tpu.pipeline_mode<synchronous>, transform_indices = @transform_4, window_bounds = array<i64: 1, 128>}, {transform_indices = @transform_5, window_bounds = array<i64: 256, 1>}]} {
    %c0_i32 = arith.constant 0 : i32
    %0 = arith.cmpi eq, %arg0, %c0_i32 : i32
    %1 = arith.extui %0 : i1 to i32
    %c0_i32_0 = arith.constant 0 : i32
    %2 = arith.cmpi ne, %1, %c0_i32_0 : i32
    scf.if %2 {
      %cst_21 = arith.constant 0.000000e+00 : f32
      %30 = vector.broadcast %cst_21 : f32 to vector<128x128xf32>
      %c0_22 = arith.constant 0 : index
      %c0_23 = arith.constant 0 : index
      %31 = vector.load %arg7[%c0_22, %c0_23] : memref<128x128xf32, #tpu.memory_space<vmem>>, vector<128x128xf32>
      tpu.vector_store %arg7[%c0_22, %c0_23], %30 {strides = array<i32>} : memref<128x128xf32, #tpu.memory_space<vmem>>, vector<128x128xf32>,
      %cst_24 = arith.constant 0.000000e+00 : f32
      %32 = vector.broadcast %cst_24 : f32 to vector<1x128xf32>
      %c0_25 = arith.constant 0 : index
      %c0_26 = arith.constant 0 : index
      %33 = vector.load %arg8[%c0_25, %c0_26] : memref<1x128xf32, #tpu.memory_space<vmem>>, vector<1x128xf32>
      tpu.vector_store %arg8[%c0_25, %c0_26], %32 {strides = array<i32>} : memref<1x128xf32, #tpu.memory_space<vmem>>, vector<1x128xf32>,
    } else {
    }
    %c0 = arith.constant 0 : index
    %c0_1 = arith.constant 0 : index
    %3 = vector.load %arg2[%c0, %c0_1] : memref<256x128xi8, #tpu.memory_space<vmem>>, vector<256x128xi8>
    %4 = arith.sitofp %3 : vector<256x128xi8> to vector<256x128xf32>
    %cst = arith.constant dense<0.000000e+00> : vector<256xf32>
    %5 = vector.multi_reduction <add>, %4, %cst [1] : vector<256x128xf32> to vector<256xf32>
    %6 = vector.shape_cast %5 : vector<256xf32> to vector<256x1xf32>
    %c0_2 = arith.constant 0 : index
    %c0_3 = arith.constant 0 : index
    %7 = vector.load %arg8[%c0_2, %c0_3] : memref<1x128xf32, #tpu.memory_space<vmem>>, vector<1x128xf32>
    %cst_4 = arith.constant dense<0.000000e+00> : vector<128xf32>
    %8 = vector.multi_reduction <add>, %4, %cst_4 [0] : vector<256x128xf32> to vector<128xf32>
    %9 = vector.shape_cast %8 : vector<128xf32> to vector<1x128xf32>
    %10 = arith.addf %7, %9 : vector<1x128xf32>
    %c0_5 = arith.constant 0 : index
    %c0_6 = arith.constant 0 : index
    %11 = vector.load %arg8[%c0_5, %c0_6] : memref<1x128xf32, #tpu.memory_space<vmem>>, vector<1x128xf32>
    tpu.vector_store %arg8[%c0_5, %c0_6], %10 {strides = array<i32>} : memref<1x128xf32, #tpu.memory_space<vmem>>, vector<1x128xf32>,
    %cst_7 = arith.constant 9.99999974E-6 : f32
    %12 = vector.broadcast %cst_7 : f32 to vector<256x1xf32>
    %13 = arith.addf %6, %12 : vector<256x1xf32>
    %14 = math.rsqrt %13 : vector<256x1xf32>
    %c0_8 = arith.constant 0 : index
    %c0_9 = arith.constant 0 : index
    %15 = vector.load %arg6[%c0_8, %c0_9] : memref<256x1xf32, #tpu.memory_space<vmem>>, vector<256x1xf32>
    tpu.vector_store %arg6[%c0_8, %c0_9], %14 {strides = array<i32>} : memref<256x1xf32, #tpu.memory_space<vmem>>, vector<256x1xf32>,
    %c0_10 = arith.constant 0 : index
    %c0_11 = arith.constant 0 : index
    %16 = vector.load %arg1[%c0_10, %c0_11] : memref<256x128xbf16, #tpu.memory_space<vmem>>, vector<256x128xbf16>
    %c0_12 = arith.constant 0 : index
    %c0_13 = arith.constant 0 : index
    %17 = vector.load %arg3[%c0_12, %c0_13] : memref<128x128xbf16, #tpu.memory_space<vmem>>, vector<128x128xbf16>
    %cst_14 = arith.constant dense<0.000000e+00> : vector<256x128xf32>
    %18 = tpu.matmul %16, %17, %cst_14 {dimension_numbers = #tpu.dot_dimension_numbers<[1], [0], [0], [1], [0, 0, 1, 1], [], []>} : vector<256x128xbf16>, vector<128x128xbf16>, vector<256x128xf32> -> vector<256x128xf32>
    %19 = vector.broadcast %14 : vector<256x1xf32> to vector<256x128xf32>
    %20 = arith.mulf %19, %18 : vector<256x128xf32>
    %21 = arith.truncf %20 : vector<256x128xf32> to vector<256x128xbf16>
    %c0_15 = arith.constant 0 : index
    %c0_16 = arith.constant 0 : index
    %22 = vector.load %arg7[%c0_15, %c0_16] : memref<128x128xf32, #tpu.memory_space<vmem>>, vector<128x128xf32>
    %23 = arith.sitofp %3 : vector<256x128xi8> to vector<256x128xbf16>
    %cst_17 = arith.constant dense<0.000000e+00> : vector<128x128xf32>
    %24 = tpu.matmul %23, %21, %cst_17 {dimension_numbers = #tpu.dot_dimension_numbers<[0], [0], [1], [1], [0, 1, 1, 1], [], []>} : vector<256x128xbf16>, vector<256x128xbf16>, vector<128x128xf32> -> vector<128x128xf32>
    %25 = arith.addf %22, %24 : vector<128x128xf32>
    %c0_18 = arith.constant 0 : index
    %c0_19 = arith.constant 0 : index
    %26 = vector.load %arg7[%c0_18, %c0_19] : memref<128x128xf32, #tpu.memory_space<vmem>>, vector<128x128xf32>
    tpu.vector_store %arg7[%c0_18, %c0_19], %25 {strides = array<i32>} : memref<128x128xf32, #tpu.memory_space<vmem>>, vector<128x128xf32>,
    %c2_i32 = arith.constant 2 : i32
    %27 = arith.cmpi eq, %arg0, %c2_i32 : i32
    %28 = arith.extui %27 : i1 to i32
    %c0_i32_20 = arith.constant 0 : i32
    %29 = arith.cmpi ne, %28, %c0_i32_20 : i32
    scf.if %29 {
      %c0_21 = arith.constant 0 : index
      %c0_22 = arith.constant 0 : index
      %30 = vector.load %arg8[%c0_21, %c0_22] : memref<1x128xf32, #tpu.memory_space<vmem>>, vector<1x128xf32>
      %cst_23 = arith.constant 9.99999974E-6 : f32
      %31 = vector.broadcast %cst_23 : f32 to vector<1x128xf32>
      %32 = arith.addf %30, %31 : vector<1x128xf32>
      %33 = tpu.reciprocal %32 {approx = true} : vector<1x128xf32> -> vector<1x128xf32>
      %c0_24 = arith.constant 0 : index
      %c0_25 = arith.constant 0 : index
      %34 = vector.load %arg5[%c0_24, %c0_25] : memref<1x128xf32, #tpu.memory_space<vmem>>, vector<1x128xf32>
      tpu.vector_store %arg5[%c0_24, %c0_25], %33 {strides = array<i32>} : memref<1x128xf32, #tpu.memory_space<vmem>>, vector<1x128xf32>,
      %c0_26 = arith.constant 0 : index
      %c0_27 = arith.constant 0 : index
      %35 = vector.load %arg7[%c0_26, %c0_27] : memref<128x128xf32, #tpu.memory_space<vmem>>, vector<128x128xf32>
      %36 = arith.truncf %35 : vector<128x128xf32> to vector<128x128xbf16>
      %c0_28 = arith.constant 0 : index
      %c0_29 = arith.constant 0 : index
      %37 = vector.load %arg4[%c0_28, %c0_29] : memref<128x128xbf16, #tpu.memory_space<vmem>>, vector<128x128xbf16>
      tpu.vector_store %arg4[%c0_28, %c0_29], %36 {strides = array<i32>} : memref<128x128xbf16, #tpu.memory_space<vmem>>, vector<128x128xbf16>,
    } else {
    }
    return
  }
  func.func @transform_0(%arg0: i32) -> (i32, i32) {
    %c0_i32 = arith.constant 0 : i32
    %c0_i32_0 = arith.constant 0 : i32
    return %arg0, %c0_i32 : i32, i32
  }
  func.func @transform_1(%arg0: i32) -> (i32, i32) {
    %c0_i32 = arith.constant 0 : i32
    %c0_i32_0 = arith.constant 0 : i32
    return %arg0, %c0_i32 : i32, i32
  }
  func.func @transform_2(%arg0: i32) -> (i32, i32) {
    %c0_i32 = arith.constant 0 : i32
    %c0_i32_0 = arith.constant 0 : i32
    %c0_i32_1 = arith.constant 0 : i32
    return %c0_i32, %c0_i32_0 : i32, i32
  }
  func.func @transform_3(%arg0: i32) -> (i32, i32) {
    %c0_i32 = arith.constant 0 : i32
    %c0_i32_0 = arith.constant 0 : i32
    %c0_i32_1 = arith.constant 0 : i32
    return %c0_i32, %c0_i32_0 : i32, i32
  }
  func.func @transform_4(%arg0: i32) -> (i32, i32) {
    %c0_i32 = arith.constant 0 : i32
    %c0_i32_0 = arith.constant 0 : i32
    %c0_i32_1 = arith.constant 0 : i32
    return %c0_i32, %c0_i32_0 : i32, i32
  }
  func.func @transform_5(%arg0: i32) -> (i32, i32) {
    %c0_i32 = arith.constant 0 : i32
    %c0_i32_0 = arith.constant 0 : i32
    return %arg0, %c0_i32 : i32, i32
  }
}

module attributes {stable_mosaic.version = 11 : i64} {
  func.func @_node_out_kernel(%arg0: i32, %arg1: memref<256x128xi8, #tpu.memory_space<vmem>>, %arg2: memref<128x128xbf16, #tpu.memory_space<vmem>>, %arg3: memref<1x128xf32, #tpu.memory_space<vmem>>, %arg4: memref<256x1xf32, #tpu.memory_space<vmem>>, %arg5: memref<1x128xf32, #tpu.memory_space<vmem>>, %arg6: memref<256x128xf32, #tpu.memory_space<vmem>>) attributes {dimension_semantics = [#tpu.dimension_semantics<parallel>], iteration_bounds = array<i64: 3>, scalar_prefetch = 0 : i64, scratch_operands = 0 : i64, tpu.core_type = #tpu.core_type<tc>, window_params = [{transform_indices = @transform_0, window_bounds = array<i64: 256, 128>}, {pipeline_mode = #tpu.pipeline_mode<synchronous>, transform_indices = @transform_1, window_bounds = array<i64: 128, 128>}, {pipeline_mode = #tpu.pipeline_mode<synchronous>, transform_indices = @transform_2, window_bounds = array<i64: 1, 128>}, {transform_indices = @transform_3, window_bounds = array<i64: 256, 1>}, {pipeline_mode = #tpu.pipeline_mode<synchronous>, transform_indices = @transform_4, window_bounds = array<i64: 1, 128>}, {transform_indices = @transform_5, window_bounds = array<i64: 256, 128>}]} {
    %c0 = arith.constant 0 : index
    %c0_0 = arith.constant 0 : index
    %0 = vector.load %arg1[%c0, %c0_0] : memref<256x128xi8, #tpu.memory_space<vmem>>, vector<256x128xi8>
    %1 = arith.sitofp %0 : vector<256x128xi8> to vector<256x128xbf16>
    %c0_1 = arith.constant 0 : index
    %c0_2 = arith.constant 0 : index
    %2 = vector.load %arg3[%c0_1, %c0_2] : memref<1x128xf32, #tpu.memory_space<vmem>>, vector<1x128xf32>
    %3 = arith.truncf %2 : vector<1x128xf32> to vector<1x128xbf16>
    %4 = vector.broadcast %3 : vector<1x128xbf16> to vector<256x128xbf16>
    %5 = arith.mulf %1, %4 : vector<256x128xbf16>
    %c0_3 = arith.constant 0 : index
    %c0_4 = arith.constant 0 : index
    %6 = vector.load %arg2[%c0_3, %c0_4] : memref<128x128xbf16, #tpu.memory_space<vmem>>, vector<128x128xbf16>
    %cst = arith.constant dense<0.000000e+00> : vector<256x128xf32>
    %7 = tpu.matmul %5, %6, %cst {dimension_numbers = #tpu.dot_dimension_numbers<[1], [0], [0], [1], [0, 0, 1, 1], [], []>} : vector<256x128xbf16>, vector<128x128xbf16>, vector<256x128xf32> -> vector<256x128xf32>
    %c0_5 = arith.constant 0 : index
    %c0_6 = arith.constant 0 : index
    %8 = vector.load %arg4[%c0_5, %c0_6] : memref<256x1xf32, #tpu.memory_space<vmem>>, vector<256x1xf32>
    %9 = vector.broadcast %8 : vector<256x1xf32> to vector<256x128xf32>
    %10 = arith.mulf %9, %7 : vector<256x128xf32>
    %c0_7 = arith.constant 0 : index
    %c0_8 = arith.constant 0 : index
    %11 = vector.load %arg5[%c0_7, %c0_8] : memref<1x128xf32, #tpu.memory_space<vmem>>, vector<1x128xf32>
    %12 = vector.broadcast %11 : vector<1x128xf32> to vector<256x128xf32>
    %13 = arith.addf %10, %12 : vector<256x128xf32>
    %c0_9 = arith.constant 0 : index
    %c0_10 = arith.constant 0 : index
    %14 = vector.load %arg6[%c0_9, %c0_10] : memref<256x128xf32, #tpu.memory_space<vmem>>, vector<256x128xf32>
    tpu.vector_store %arg6[%c0_9, %c0_10], %13 {strides = array<i32>} : memref<256x128xf32, #tpu.memory_space<vmem>>, vector<256x128xf32>,
    return
  }
  func.func @transform_0(%arg0: i32) -> (i32, i32) {
    %c0_i32 = arith.constant 0 : i32
    %c0_i32_0 = arith.constant 0 : i32
    return %arg0, %c0_i32 : i32, i32
  }
  func.func @transform_1(%arg0: i32) -> (i32, i32) {
    %c0_i32 = arith.constant 0 : i32
    %c0_i32_0 = arith.constant 0 : i32
    %c0_i32_1 = arith.constant 0 : i32
    return %c0_i32, %c0_i32_0 : i32, i32
  }
  func.func @transform_2(%arg0: i32) -> (i32, i32) {
    %c0_i32 = arith.constant 0 : i32
    %c0_i32_0 = arith.constant 0 : i32
    %c0_i32_1 = arith.constant 0 : i32
    return %c0_i32, %c0_i32_0 : i32, i32
  }
  func.func @transform_3(%arg0: i32) -> (i32, i32) {
    %c0_i32 = arith.constant 0 : i32
    %c0_i32_0 = arith.constant 0 : i32
    return %arg0, %c0_i32 : i32, i32
  }
  func.func @transform_4(%arg0: i32) -> (i32, i32) {
    %c0_i32 = arith.constant 0 : i32
    %c0_i32_0 = arith.constant 0 : i32
    %c0_i32_1 = arith.constant 0 : i32
    return %c0_i32, %c0_i32_0 : i32, i32
  }
  func.func @transform_5(%arg0: i32) -> (i32, i32) {
    %c0_i32 = arith.constant 0 : i32
    %c0_i32_0 = arith.constant 0 : i32
    return %arg0, %c0_i32 : i32, i32
  }
}

</mosaic_0001>

<llo_original>
// kernel: hypergraph_conv.3
$region0: #{hypergraph_conv.3}
  #allocation0 [shape = 'u32[]', space=smem, size = 0x4, offset = 0x4, fixed_abs, tag = 'smem constant byte address 0x4 - core index']
  #allocation1 [shape = 'u32[144,128]{1,0:T(1,128)}', space=vmem, size = 0x12000, scoped, tag = 'internal scratch']
  %s0 = inlined_call_operand.vmem [shape: s8[768,128], index: 0, kind: input, shape index: {}]
  %s1 = inlined_call_operand.vmem [shape: bf16[128,128], index: 1, kind: input, shape index: {}]
  %s2 = inlined_call_operand.vmem [shape: f32[1,128], index: 2, kind: input, shape index: {}]
  %s3 = inlined_call_operand.vmem [shape: f32[768,1], index: 3, kind: input, shape index: {}]
  %s4 = inlined_call_operand.vmem [shape: f32[1,128], index: 4, kind: input, shape index: {}]
  %s5 = inlined_call_operand.vmem [shape: f32[768,128], index: 5, kind: output, shape index: {}]
  %s6 = sld [smem:[#allocation0]]
  $region53: #{hypergraph_conv.3} parent=0
    _
  %s8 = ssub.s32 1, %s6
  %s9 = scalar_select 0, %s8, %s6
  loop: start=0, step=1, limit=5
  $region2: #{hypergraph_conv.3} parent=0 // loop_pre_header
    _
  $region3: #{hypergraph_conv.3} parent=0 // loop_header
    %s11 = sphi 0, %s15
    %p12 = scmp.ge.s32.totalorder %s11, 5
    %s21 = sphi 0, %s23
    %s24 = sphi 0, %s21
    %s25 = sphi 0, %s24
    %s41 = sphi 0, %s25
    %s45 = sphi 0, %s45
    %s47 = sphi 0, %s45
    %s48 = sphi 0, %s47
    %s62 = sphi 0, %s48
    %s66 = sphi 0, %s66
    %s68 = sphi 0, %s66
    %s69 = sphi 0, %s68
    %s83 = sphi 0, %s69
    %s89 = sphi 0, %s91
    %s92 = sphi 0, %s89
    %s93 = sphi 0, %s92
    %s109 = sphi 0, %s93
    %s113 = sphi 0, %s113
    %s115 = sphi 0, %s113
    %s116 = sphi 0, %s115
    %s130 = sphi 0, %s116
    %s136 = sphi 0, %s138
    %s139 = sphi 0, %s136
    %s140 = sphi 0, %s139
    %s156 = sphi 0, %s140
  $region4: #{hypergraph_conv.3} parent=0 // loop_header_branch
    %14 = sbr.rel (%p12) target = $region8
  $region5: #{hypergraph_conv.3} parent=0 // loop_body
    %s16 = ssub.s32 %s11, 1
    %s17 = ssub.s32 %s11, 2
    %s18 = sadd.s32 %s11, 1
    %s19 = ssub.s32 %s11, %s18
    %p20 = scmp.eq.s32.totalorder %s19, 0
    %s22 = sadd.s32 %s21, 1
    %s23 = scalar_select %p20, %s21, %s22
    %p26 = pneg %p20
    %p27 = scmp.eq.s32.totalorder %s11, 2
    %p28 = por %p26, %p27
    %p29 = scmp.ne.s32.totalorder %s21, %s24
    %p30 = scmp.eq.s32.totalorder %s11, 0
    %p31 = por %p29, %p30
    %p32 = scmp.ne.s32.totalorder %s21, %s24
    %p33 = scmp.eq.s32.totalorder %s16, 2
    %p34 = por %p32, %p33
    %p35 = scmp.ne.s32.totalorder %s24, %s25
    %p36 = scmp.eq.s32.totalorder %s16, 0
    %p37 = por %p35, %p36
    %p38 = scmp.ne.s32.totalorder %s24, %s25
    %p39 = scmp.eq.s32.totalorder %s17, 2
    %p40 = por %p38, %p39
    %p42 = scmp.ne.s32.totalorder %s25, %s41
    %p43 = scmp.eq.s32.totalorder %s17, 0
    %p44 = por %p42, %p43
    %s46 = sadd.s32 %s45, 1
    %p49 = scmp.eq.s32.totalorder %s11, 2
    %p50 = scmp.ne.s32.totalorder %s45, %s47
    %p51 = scmp.eq.s32.totalorder %s11, 0
    %p52 = por %p50, %p51
    %p53 = scmp.ne.s32.totalorder %s45, %s47
    %p54 = scmp.eq.s32.totalorder %s16, 2
    %p55 = por %p53, %p54
    %p56 = scmp.ne.s32.totalorder %s47, %s48
    %p57 = scmp.eq.s32.totalorder %s16, 0
    %p58 = por %p56, %p57
    %p59 = scmp.ne.s32.totalorder %s47, %s48
    %p60 = scmp.eq.s32.totalorder %s17, 2
    %p61 = por %p59, %p60
    %p63 = scmp.ne.s32.totalorder %s48, %s62
    %p64 = scmp.eq.s32.totalorder %s17, 0
    %p65 = por %p63, %p64
    %s67 = sadd.s32 %s66, 1
    %p70 = scmp.eq.s32.totalorder %s11, 2
    %p71 = scmp.ne.s32.totalorder %s66, %s68
    %p72 = scmp.eq.s32.totalorder %s11, 0
    %p73 = por %p71, %p72
    %p74 = scmp.ne.s32.totalorder %s66, %s68
    %p75 = scmp.eq.s32.totalorder %s16, 2
    %p76 = por %p74, %p75
    %p77 = scmp.ne.s32.totalorder %s68, %s69
    %p78 = scmp.eq.s32.totalorder %s16, 0
    %p79 = por %p77, %p78
    %p80 = scmp.ne.s32.totalorder %s68, %s69
    %p81 = scmp.eq.s32.totalorder %s17, 2
    %p82 = por %p80, %p81
    %p84 = scmp.ne.s32.totalorder %s69, %s83
    %p85 = scmp.eq.s32.totalorder %s17, 0
    %p86 = por %p84, %p85
    %s87 = ssub.s32 %s11, %s18
    %p88 = scmp.eq.s32.totalorder %s87, 0
    %s90 = sadd.s32 %s89, 1
    %s91 = scalar_select %p88, %s89, %s90
    %p94 = pneg %p88
    %p95 = scmp.eq.s32.totalorder %s11, 2
    %p96 = por %p94, %p95
    %p97 = scmp.ne.s32.totalorder %s89, %s92
    %p98 = scmp.eq.s32.totalorder %s11, 0
    %p99 = por %p97, %p98
    %p100 = scmp.ne.s32.totalorder %s89, %s92
    %p101 = scmp.eq.s32.totalorder %s16, 2
    %p102 = por %p100, %p101
    %p103 = scmp.ne.s32.totalorder %s92, %s93
    %p104 = scmp.eq.s32.totalorder %s16, 0
    %p105 = por %p103, %p104
    %p106 = scmp.ne.s32.totalorder %s92, %s93
    %p107 = scmp.eq.s32.totalorder %s17, 2
    %p108 = por %p106, %p107
    %p110 = scmp.ne.s32.totalorder %s93, %s109
    %p111 = scmp.eq.s32.totalorder %s17, 0
    %p112 = por %p110, %p111
    %s114 = sadd.s32 %s113, 1
    %p117 = scmp.eq.s32.totalorder %s11, 2
    %p118 = scmp.ne.s32.totalorder %s113, %s115
    %p119 = scmp.eq.s32.totalorder %s11, 0
    %p120 = por %p118, %p119
    %p121 = scmp.ne.s32.totalorder %s113, %s115
    %p122 = scmp.eq.s32.totalorder %s16, 2
    %p123 = por %p121, %p122
    %p124 = scmp.ne.s32.totalorder %s115, %s116
    %p125 = scmp.eq.s32.totalorder %s16, 0
    %p126 = por %p124, %p125
    %p127 = scmp.ne.s32.totalorder %s115, %s116
    %p128 = scmp.eq.s32.totalorder %s17, 2
    %p129 = por %p127, %p128
    %p131 = scmp.ne.s32.totalorder %s116, %s130
    %p132 = scmp.eq.s32.totalorder %s17, 0
    %p133 = por %p131, %p132
    %s134 = ssub.s32 %s11, %s18
    %p135 = scmp.eq.s32.totalorder %s134, 0
    %s137 = sadd.s32 %s136, 1
    %s138 = scalar_select %p135, %s136, %s137
    %p141 = pneg %p135
    %p142 = scmp.eq.s32.totalorder %s11, 2
    %p143 = por %p141, %p142
    %p144 = scmp.ne.s32.totalorder %s136, %s139
    %p145 = scmp.eq.s32.totalorder %s11, 0
    %p146 = por %p144, %p145
    %p147 = scmp.ne.s32.totalorder %s136, %s139
    %p148 = scmp.eq.s32.totalorder %s16, 2
    %p149 = por %p147, %p148
    %p150 = scmp.ne.s32.totalorder %s139, %s140
    %p151 = scmp.eq.s32.totalorder %s16, 0
    %p152 = por %p150, %p151
    %p153 = scmp.ne.s32.totalorder %s139, %s140
    %p154 = scmp.eq.s32.totalorder %s17, 2
    %p155 = por %p153, %p154
    %p157 = scmp.ne.s32.totalorder %s140, %s156
    %p158 = scmp.eq.s32.totalorder %s17, 0
    %p159 = por %p157, %p158
    %p160 = scmp.le.s32.totalorder 1, %s11
    %p161 = scmp.lt.s32.totalorder %s11, 4
    %p162 = pnand %p160, %p161
    %p163 = pneg %p162
    // Predicated region
    $region9: #{hypergraph_conv.3} parent=5 // pred_check
      _
    $region10: #{hypergraph_conv.3} parent=5 // pred_check_branch
      %165 = sbr.rel (%p162) target = $region12
    $region11: #{hypergraph_conv.3} parent=5 // pred_region
      %s166 = ssub.s32 %s11, 1
      // Predicated region
      $region13: #{hypergraph_conv.3} parent=11 // pred_check
        %p167 = pneg %p58
      $region14: #{hypergraph_conv.3} parent=11 // pred_check_branch
        %169 = sbr.rel (%p167) target = $region16
      $region15: #{hypergraph_conv.3} parent=11 // pred_region
        _
      $region16: #{hypergraph_conv.3} parent=11 // pred_fallthru
        _
      // Predicated region
      $region17: #{hypergraph_conv.3} parent=11 // pred_check
        %p170 = pneg %p79
      $region18: #{hypergraph_conv.3} parent=11 // pred_check_branch
        %172 = sbr.rel (%p170) target = $region20
      $region19: #{hypergraph_conv.3} parent=11 // pred_region
        _
      $region20: #{hypergraph_conv.3} parent=11 // pred_fallthru
        _
      // Predicated region
      $region21: #{hypergraph_conv.3} parent=11 // pred_check
        %p173 = pneg %p126
      $region22: #{hypergraph_conv.3} parent=11 // pred_check_branch
        %175 = sbr.rel (%p173) target = $region24
      $region23: #{hypergraph_conv.3} parent=11 // pred_region
        _
      $region24: #{hypergraph_conv.3} parent=11 // pred_fallthru
        _
    $region12: #{hypergraph_conv.3} parent=5 // pred_fallthru
      _
    %p176 = scmp.lt.s32.totalorder %s11, 3
    // Predicated region
    $region25: #{hypergraph_conv.3} parent=5 // pred_check
      %p177 = pneg %p176
    $region26: #{hypergraph_conv.3} parent=5 // pred_check_branch
      %179 = sbr.rel (%p177) target = $region28
    $region27: #{hypergraph_conv.3} parent=5 // pred_region
      // Predicated region
      $region29: #{hypergraph_conv.3} parent=27 // pred_check
        %p180 = pneg %p31
      $region30: #{hypergraph_conv.3} parent=27 // pred_check_branch
        %182 = sbr.rel (%p180) target = $region32
      $region31: #{hypergraph_conv.3} parent=27 // pred_region
        %s183 = smul.u32 8, %s11
        %p184 = scmp.lt.s32.totalorder %s183, 23
        %s185 = scalar_select %p184, %s183, 23
        %s186 = smul.addr %s185, 8
        %s187 = scalar_lea.vmem %s0, %s186
        %s188 = smul.u32 8, %s11
      $region32: #{hypergraph_conv.3} parent=27 // pred_fallthru
        _
      // Predicated region
      $region33: #{hypergraph_conv.3} parent=27 // pred_check
        %p189 = pneg %p99
      $region34: #{hypergraph_conv.3} parent=27 // pred_check_branch
        %191 = sbr.rel (%p189) target = $region36
      $region35: #{hypergraph_conv.3} parent=27 // pred_region
        %s192 = smul.u32 32, %s11
        %p193 = scmp.lt.s32.totalorder %s192, 95
        %s194 = scalar_select %p193, %s192, 95
        %s195 = smul.addr %s194, 8
        %s196 = scalar_lea.vmem %s3, %s195
        %s197 = smul.u32 32, %s11
      $region36: #{hypergraph_conv.3} parent=27 // pred_fallthru
        _
    $region28: #{hypergraph_conv.3} parent=5 // pred_fallthru
      _
    %p198 = scmp.le.s32.totalorder 1, %s11
    %p199 = scmp.lt.s32.totalorder %s11, 4
    %p200 = pnand %p198, %p199
    %p201 = pneg %p200
    // Predicated region
    $region37: #{hypergraph_conv.3} parent=5 // pred_check
      _
    $region38: #{hypergraph_conv.3} parent=5 // pred_check_branch
      %203 = sbr.rel (%p200) target = $region40
    $region39: #{hypergraph_conv.3} parent=5 // pred_region
      %s204 = ssub.s32 %s11, 1
      %s205 = smul.u32 8, %s16
      %p206 = scmp.lt.s32.totalorder %s205, 23
      %s207 = scalar_select %p206, %s205, 23
      %s208 = smul.addr %s207, 8
      %s209 = scalar_lea.vmem %s0, %s208
      %p210 = pneg %p37
      %p211 = pneg %p34
      %p212 = pneg %p58
      %p213 = pneg %p55
      %p214 = pneg %p79
      %p215 = pneg %p76
      %s216 = smul.u32 32, %s16
      %p217 = scmp.lt.s32.totalorder %s216, 95
      %s218 = scalar_select %p217, %s216, 95
      %s219 = smul.addr %s218, 8
      %s220 = scalar_lea.vmem %s3, %s219
      %p221 = pneg %p105
      %p222 = pneg %p102
      %p223 = pneg %p126
      %p224 = pneg %p123
      %p225 = pneg %p152
      %p226 = pneg %p149
      %s227 = smul.u32 32, %s16
      %p228 = scmp.lt.s32.totalorder %s227, 95
      %s229 = scalar_select %p228, %s227, 95
      %s230 = smul.addr %s229, 8
      %s231 = scalar_lea.vmem %s5, %s230
      %s232 = smul.u32 8, %s16
      %p233 = scmp.lt.s32.totalorder %s232, 23
      %s234 = scalar_select %p233, %s232, 23
      %s235 = smul.addr %s234, 8
      %s236 = scalar_lea.vmem %s0, %s235
      %s237 = smul.u32 8, %s16
      %s238 = smul.u32 32, %s16
      %p239 = scmp.lt.s32.totalorder %s238, 95
      %s240 = scalar_select %p239, %s238, 95
      %s241 = smul.addr %s240, 8
      %s242 = scalar_lea.vmem %s3, %s241
      %s243 = smul.u32 32, %s16
      %s244 = smul.u32 32, %s16
      %p245 = scmp.lt.s32.totalorder %s244, 95
      %s246 = scalar_select %p245, %s244, 95
      %s247 = smul.addr %s246, 8
      %s248 = scalar_lea.vmem %s5, %s247
      %s249 = smul.u32 32, %s16
      %v251 = vld [vmem:[%s236] sm:$0xff]
      %v252 = vld [vmem:[%s236 + $0x8] sm:$0xff]
      %v253 = vld [vmem:[%s236 + $0x10] sm:$0xff]
      %v254 = vld [vmem:[%s236 + $0x18] sm:$0xff]
      %v255 = vld [vmem:[%s236 + $0x20] sm:$0xff]
      %v256 = vld [vmem:[%s236 + $0x28] sm:$0xff]
      %v257 = vld [vmem:[%s236 + $0x30] sm:$0xff]
      %v258 = vld [vmem:[%s236 + $0x38] sm:$0xff]
      %v259 = vunpack.c.l.s8.bf16 %v251
      %v260 = vunpack.c.h.s8.bf16 %v251
      %v261 = vunpack.c.l.s8.bf16 %v252
      %v262 = vunpack.c.h.s8.bf16 %v252
      %v263 = vunpack.c.l.s8.bf16 %v253
      %v264 = vunpack.c.h.s8.bf16 %v253
      %v265 = vunpack.c.l.s8.bf16 %v254
      %v266 = vunpack.c.h.s8.bf16 %v254
      %v267 = vunpack.c.l.s8.bf16 %v255
      %v268 = vunpack.c.h.s8.bf16 %v255
      %v269 = vunpack.c.l.s8.bf16 %v256
      %v270 = vunpack.c.h.s8.bf16 %v256
      %v271 = vunpack.c.l.s8.bf16 %v257
      %v272 = vunpack.c.h.s8.bf16 %v257
      %v273 = vunpack.c.l.s8.bf16 %v258
      %v274 = vunpack.c.h.s8.bf16 %v258
      %v275 = vld [vmem:[%s2] sm:$0x1]
      %v276 = vpack.c.bf16 %v275, %v275
      %v278 = vpack.i.b16 %v276, %v276
      %v280 = vlaneseq
      %v281 = vshrl.u32 %v280, 7
      %v282 = vsub.s32 0, %v281
      %v283 = vrot.slane %v278, %v282
      %v284 = vmul.bf16 %v259, %v283
      %v285 = vmul.bf16 %v260, %v283
      %v286 = vmul.bf16 %v261, %v283
      %v287 = vmul.bf16 %v262, %v283
      %v288 = vmul.bf16 %v263, %v283
      %v289 = vmul.bf16 %v264, %v283
      %v290 = vmul.bf16 %v265, %v283
      %v291 = vmul.bf16 %v266, %v283
      %v292 = vmul.bf16 %v267, %v283
      %v293 = vmul.bf16 %v268, %v283
      %v294 = vmul.bf16 %v269, %v283
      %v295 = vmul.bf16 %v270, %v283
      %v296 = vmul.bf16 %v271, %v283
      %v297 = vmul.bf16 %v272, %v283
      %v298 = vmul.bf16 %v273, %v283
      %v299 = vmul.bf16 %v274, %v283
      %v300 = vld [vmem:[%s1] sm:$0xf]
      %v301 = vld [vmem:[%s1 + $0x4] sm:$0xf]
      %v302 = vld [vmem:[%s1 + $0x8] sm:$0xf]
      %v303 = vld [vmem:[%s1 + $0xc] sm:$0xf]
      %v304 = vld [vmem:[%s1 + $0x10] sm:$0xf]
      %v305 = vld [vmem:[%s1 + $0x14] sm:$0xf]
      %v306 = vld [vmem:[%s1 + $0x18] sm:$0xf]
      %v307 = vld [vmem:[%s1 + $0x1c] sm:$0xf]
      %v308 = vld [vmem:[%s1 + $0x20] sm:$0xf]
      %v309 = vld [vmem:[%s1 + $0x24] sm:$0xf]
      %v310 = vld [vmem:[%s1 + $0x28] sm:$0xf]
      %v311 = vld [vmem:[%s1 + $0x2c] sm:$0xf]
      %v312 = vld [vmem:[%s1 + $0x30] sm:$0xf]
      %v313 = vld [vmem:[%s1 + $0x34] sm:$0xf]
      %v314 = vld [vmem:[%s1 + $0x38] sm:$0xf]
      %v315 = vld [vmem:[%s1 + $0x3c] sm:$0xf]
      %v332 = vunpack.c.l.b16 %v300
      %v333 = vunpack.c.l.b16 %v301
      %v334 = vunpack.c.l.b16 %v302
      %v335 = vunpack.c.l.b16 %v303
      %v336 = vunpack.c.l.b16 %v304
      %v337 = vunpack.c.l.b16 %v305
      %v338 = vunpack.c.l.b16 %v306
      %v339 = vunpack.c.l.b16 %v307
      %v340 = vunpack.c.l.b16 %v308
      %v341 = vunpack.c.l.b16 %v309
      %v342 = vunpack.c.l.b16 %v310
      %v343 = vunpack.c.l.b16 %v311
      %v344 = vunpack.c.l.b16 %v312
      %v345 = vunpack.c.l.b16 %v313
      %v346 = vunpack.c.l.b16 %v314
      %v347 = vunpack.c.l.b16 %v315
      %v348 = vpack.c.b16 %v333, %v332
      %v349 = vpack.c.b16 %v335, %v334
      %v350 = vpack.c.b16 %v337, %v336
      %v351 = vpack.c.b16 %v339, %v338
      %v352 = vpack.c.b16 %v341, %v340
      %v353 = vpack.c.b16 %v343, %v342
      %v354 = vpack.c.b16 %v345, %v344
      %v355 = vpack.c.b16 %v347, %v346
      %364 = vmatprep.subr.bf16.mxu0 0
      %365 = vmatpush1.bf16.msra.mxu0 %v348
      %366 = vmatprep.subr.bf16.mxu0 0
      %367 = vmatpush1.bf16.msra.mxu0 %v349
      %368 = vmatprep.subr.bf16.mxu0 0
      %369 = vmatpush1.bf16.msra.mxu0 %v350
      %370 = vmatprep.subr.bf16.mxu0 0
      %371 = vmatpush1.bf16.msra.mxu0 %v351
      %372 = vmatprep.subr.bf16.mxu0 0
      %373 = vmatpush1.bf16.msra.mxu0 %v352
      %374 = vmatprep.subr.bf16.mxu0 0
      %375 = vmatpush1.bf16.msra.mxu0 %v353
      %376 = vmatprep.subr.bf16.mxu0 0
      %377 = vmatpush1.bf16.msra.mxu0 %v354
      %378 = vmatprep.subr.bf16.mxu0 0
      %379 = vmatpush1.bf16.msra.mxu0 %v355
      %380 = vmatprep.subr.bf16.mxu0 0
      %381 = vmatpush1.bf16.msra.mxu0 0
      %382 = vmatprep.subr.bf16.mxu0 0
      %383 = vmatpush1.bf16.msra.mxu0 0
      %384 = vmatprep.subr.bf16.mxu0 0
      %385 = vmatpush1.bf16.msra.mxu0 0
      %386 = vmatprep.subr.bf16.mxu0 0
      %387 = vmatpush1.bf16.msra.mxu0 0
      %388 = vmatprep.subr.bf16.mxu0 0
      %389 = vmatpush1.bf16.msra.mxu0 0
      %390 = vmatprep.subr.bf16.mxu0 0
      %391 = vmatpush1.bf16.msra.mxu0 0
      %392 = vmatprep.subr.bf16.mxu0 0
      %393 = vmatpush1.bf16.msra.mxu0 0
      %394 = vmatprep.subr.bf16.mxu0 0
      %395 = vmatpush1.bf16.msra.mxu0 0
      %396 = vmatprep.mubr.bf16.mxu0 0
      %397 = vmatmul.mubr.bf16.gmra.mrb[0].mxu0 %v284
      %v398 = vpop.f32.mrb[0].mxu0
      %v399 = vadd.f32 0.0, %v398
      %v400 = vpop.f32.mrb[0].mxu0
      %v401 = vpop.f32.mrb[0].mxu0
      %v402 = vadd.f32 0.0, %v401
      %v403 = vpop.f32.mrb[0].mxu0
      %404 = vmatprep.mubr.bf16.mxu0 0
      %405 = vmatmul.mubr.bf16.gmra.mrb[0].mxu0 %v285
      %v406 = vpop.f32.mrb[0].mxu0
      %v407 = vadd.f32 0.0, %v406
      %v408 = vpop.f32.mrb[0].mxu0
      %v409 = vpop.f32.mrb[0].mxu0
      %v410 = vadd.f32 0.0, %v409
      %v411 = vpop.f32.mrb[0].mxu0
      %412 = vmatprep.mubr.bf16.mxu0 0
      %413 = vmatmul.mubr.bf16.gmra.mrb[0].mxu0 %v286
      %v414 = vpop.f32.mrb[0].mxu0
      %v415 = vadd.f32 0.0, %v414
      %v416 = vpop.f32.mrb[0].mxu0
      %v417 = vpop.f32.mrb[0].mxu0
      %v418 = vadd.f32 0.0, %v417
      %v419 = vpop.f32.mrb[0].mxu0
      %420 = vmatprep.mubr.bf16.mxu0 0
      %421 = vmatmul.mubr.bf16.gmra.mrb[0].mxu0 %v287
      %v422 = vpop.f32.mrb[0].mxu0
      %v423 = vadd.f32 0.0, %v422
      %v424 = vpop.f32.mrb[0].mxu0
      %v425 = vpop.f32.mrb[0].mxu0
      %v426 = vadd.f32 0.0, %v425
      %v427 = vpop.f32.mrb[0].mxu0
      %428 = vmatprep.mubr.bf16.mxu0 0
      %429 = vmatmul.mubr.bf16.gmra.mrb[0].mxu0 %v288
      %v430 = vpop.f32.mrb[0].mxu0
      %v431 = vadd.f32 0.0, %v430
      %v432 = vpop.f32.mrb[0].mxu0
      %v433 = vpop.f32.mrb[0].mxu0
      %v434 = vadd.f32 0.0, %v433
      %v435 = vpop.f32.mrb[0].mxu0
      %436 = vmatprep.mubr.bf16.mxu0 0
      %437 = vmatmul.mubr.bf16.gmra.mrb[0].mxu0 %v289
      %v438 = vpop.f32.mrb[0].mxu0
      %v439 = vadd.f32 0.0, %v438
      %v440 = vpop.f32.mrb[0].mxu0
      %v441 = vpop.f32.mrb[0].mxu0
      %v442 = vadd.f32 0.0, %v441
      %v443 = vpop.f32.mrb[0].mxu0
      %444 = vmatprep.mubr.bf16.mxu0 0
      %445 = vmatmul.mubr.bf16.gmra.mrb[0].mxu0 %v290
      %v446 = vpop.f32.mrb[0].mxu0
      %v447 = vadd.f32 0.0, %v446
      %v448 = vpop.f32.mrb[0].mxu0
      %v449 = vpop.f32.mrb[0].mxu0
      %v450 = vadd.f32 0.0, %v449
      %v451 = vpop.f32.mrb[0].mxu0
      %452 = vmatprep.mubr.bf16.mxu0 0
      %453 = vmatmul.mubr.bf16.gmra.mrb[0].mxu0 %v291
      %v454 = vpop.f32.mrb[0].mxu0
      %v455 = vadd.f32 0.0, %v454
      %v456 = vpop.f32.mrb[0].mxu0
      %v457 = vpop.f32.mrb[0].mxu0
      %v458 = vadd.f32 0.0, %v457
      %v459 = vpop.f32.mrb[0].mxu0
      %460 = vmatprep.mubr.bf16.mxu0 0
      %461 = vmatmul.mubr.bf16.gmra.mrb[0].mxu0 %v292
      %v462 = vpop.f32.mrb[0].mxu0
      %v463 = vadd.f32 0.0, %v462
      %v464 = vpop.f32.mrb[0].mxu0
      %v465 = vpop.f32.mrb[0].mxu0
      %v466 = vadd.f32 0.0, %v465
      %v467 = vpop.f32.mrb[0].mxu0
      %468 = vmatprep.mubr.bf16.mxu0 0
      %469 = vmatmul.mubr.bf16.gmra.mrb[0].mxu0 %v293
      %v470 = vpop.f32.mrb[0].mxu0
      %v471 = vadd.f32 0.0, %v470
      %v472 = vpop.f32.mrb[0].mxu0
      %v473 = vpop.f32.mrb[0].mxu0
      %v474 = vadd.f32 0.0, %v473
      %v475 = vpop.f32.mrb[0].mxu0
      %476 = vmatprep.mubr.bf16.mxu0 0
      %477 = vmatmul.mubr.bf16.gmra.mrb[0].mxu0 %v294
      %v478 = vpop.f32.mrb[0].mxu0
      %v479 = vadd.f32 0.0, %v478
      %v480 = vpop.f32.mrb[0].mxu0
      %v481 = vpop.f32.mrb[0].mxu0
      %v482 = vadd.f32 0.0, %v481
      %v483 = vpop.f32.mrb[0].mxu0
      %484 = vmatprep.mubr.bf16.mxu0 0
      %485 = vmatmul.mubr.bf16.gmra.mrb[0].mxu0 %v295
      %v486 = vpop.f32.mrb[0].mxu0
      %v487 = vadd.f32 0.0, %v486
      %v488 = vpop.f32.mrb[0].mxu0
      %v489 = vpop.f32.mrb[0].mxu0
      %v490 = vadd.f32 0.0, %v489
      %v491 = vpop.f32.mrb[0].mxu0
      %492 = vmatprep.mubr.bf16.mxu0 0
      %493 = vmatmul.mubr.bf16.gmra.mrb[0].mxu0 %v296
      %v494 = vpop.f32.mrb[0].mxu0
      %v495 = vadd.f32 0.0, %v494
      %v496 = vpop.f32.mrb[0].mxu0
      %v497 = vpop.f32.mrb[0].mxu0
      %v498 = vadd.f32 0.0, %v497
      %v499 = vpop.f32.mrb[0].mxu0
      %500 = vmatprep.mubr.bf16.mxu0 0
      %501 = vmatmul.mubr.bf16.gmra.mrb[0].mxu0 %v297
      %v502 = vpop.f32.mrb[0].mxu0
      %v503 = vadd.f32 0.0, %v502
      %v504 = vpop.f32.mrb[0].mxu0
      %v505 = vpop.f32.mrb[0].mxu0
      %v506 = vadd.f32 0.0, %v505
      %v507 = vpop.f32.mrb[0].mxu0
      %508 = vmatprep.mubr.bf16.mxu0 0
      %509 = vmatmul.mubr.bf16.gmra.mrb[0].mxu0 %v298
      %v510 = vpop.f32.mrb[0].mxu0
      %v511 = vadd.f32 0.0, %v510
      %v512 = vpop.f32.mrb[0].mxu0
      %v513 = vpop.f32.mrb[0].mxu0
      %v514 = vadd.f32 0.0, %v513
      %v515 = vpop.f32.mrb[0].mxu0
      %516 = vmatprep.mubr.bf16.mxu0 0
      %517 = vmatmul.mubr.bf16.gmra.mrb[0].mxu0 %v299
      %v518 = vpop.f32.mrb[0].mxu0
      %v519 = vadd.f32 0.0, %v518
      %v520 = vpop.f32.mrb[0].mxu0
      %v521 = vpop.f32.mrb[0].mxu0
      %v522 = vadd.f32 0.0, %v521
      %v523 = vpop.f32.mrb[0].mxu0
      %524 = vdwg.mxu0
      %v525 = vld [vmem:[%s242] sm:$0xff]
      %v526 = vld [vmem:[%s242 + $0x8] sm:$0xff]
      %v527 = vld [vmem:[%s242 + $0x10] sm:$0xff]
      %v528 = vld [vmem:[%s242 + $0x18] sm:$0xff]
      %v529 = vld [vmem:[%s242 + $0x20] sm:$0xff]
      %v530 = vld [vmem:[%s242 + $0x28] sm:$0xff]
      %v531 = vld [vmem:[%s242 + $0x30] sm:$0xff]
      %v532 = vld [vmem:[%s242 + $0x38] sm:$0xff]
      %v533 = vld [vmem:[%s242 + $0x40] sm:$0xff]
      %v534 = vld [vmem:[%s242 + $0x48] sm:$0xff]
      %v535 = vld [vmem:[%s242 + $0x50] sm:$0xff]
      %v536 = vld [vmem:[%s242 + $0x58] sm:$0xff]
      %v537 = vld [vmem:[%s242 + $0x60] sm:$0xff]
      %v538 = vld [vmem:[%s242 + $0x68] sm:$0xff]
      %v539 = vld [vmem:[%s242 + $0x70] sm:$0xff]
      %v540 = vld [vmem:[%s242 + $0x78] sm:$0xff]
      %v541 = vld [vmem:[%s242 + $0x80] sm:$0xff]
      %v542 = vld [vmem:[%s242 + $0x88] sm:$0xff]
      %v543 = vld [vmem:[%s242 + $0x90] sm:$0xff]
      %v544 = vld [vmem:[%s242 + $0x98] sm:$0xff]
      %v545 = vld [vmem:[%s242 + $0xa0] sm:$0xff]
      %v546 = vld [vmem:[%s242 + $0xa8] sm:$0xff]
      %v547 = vld [vmem:[%s242 + $0xb0] sm:$0xff]
      %v548 = vld [vmem:[%s242 + $0xb8] sm:$0xff]
      %v549 = vld [vmem:[%s242 + $0xc0] sm:$0xff]
      %v550 = vld [vmem:[%s242 + $0xc8] sm:$0xff]
      %v551 = vld [vmem:[%s242 + $0xd0] sm:$0xff]
      %v552 = vld [vmem:[%s242 + $0xd8] sm:$0xff]
      %v553 = vld [vmem:[%s242 + $0xe0] sm:$0xff]
      %v554 = vld [vmem:[%s242 + $0xe8] sm:$0xff]
      %v555 = vld [vmem:[%s242 + $0xf0] sm:$0xff]
      %v556 = vld [vmem:[%s242 + $0xf8] sm:$0xff]
      %558 = vset.pattern.permute.xlu0 0
      %559 = vperm.xlu0 %558, %v525
      %v560 = vpop.permute.xlu0 %559
      %563 = vset.pattern.permute.xlu0 0
      %564 = vperm.xlu0 %563, %v526
      %v565 = vpop.permute.xlu0 %564
      %568 = vset.pattern.permute.xlu0 0
      %569 = vperm.xlu0 %568, %v527
      %v570 = vpop.permute.xlu0 %569
      %573 = vset.pattern.permute.xlu0 0
      %574 = vperm.xlu0 %573, %v528
      %v575 = vpop.permute.xlu0 %574
      %578 = vset.pattern.permute.xlu0 0
      %579 = vperm.xlu0 %578, %v529
      %v580 = vpop.permute.xlu0 %579
      %583 = vset.pattern.permute.xlu0 0
      %584 = vperm.xlu0 %583, %v530
      %v585 = vpop.permute.xlu0 %584
      %588 = vset.pattern.permute.xlu0 0
      %589 = vperm.xlu0 %588, %v531
      %v590 = vpop.permute.xlu0 %589
      %593 = vset.pattern.permute.xlu0 0
      %594 = vperm.xlu0 %593, %v532
      %v595 = vpop.permute.xlu0 %594
      %598 = vset.pattern.permute.xlu0 0
      %599 = vperm.xlu0 %598, %v533
      %v600 = vpop.permute.xlu0 %599
      %603 = vset.pattern.permute.xlu0 0
      %604 = vperm.xlu0 %603, %v534
      %v605 = vpop.permute.xlu0 %604
      %608 = vset.pattern.permute.xlu0 0
      %609 = vperm.xlu0 %608, %v535
      %v610 = vpop.permute.xlu0 %609
      %613 = vset.pattern.permute.xlu0 0
      %614 = vperm.xlu0 %613, %v536
      %v615 = vpop.permute.xlu0 %614
      %618 = vset.pattern.permute.xlu0 0
      %619 = vperm.xlu0 %618, %v537
      %v620 = vpop.permute.xlu0 %619
      %623 = vset.pattern.permute.xlu0 0
      %624 = vperm.xlu0 %623, %v538
      %v625 = vpop.permute.xlu0 %624
      %628 = vset.pattern.permute.xlu0 0
      %629 = vperm.xlu0 %628, %v539
      %v630 = vpop.permute.xlu0 %629
      %633 = vset.pattern.permute.xlu0 0
      %634 = vperm.xlu0 %633, %v540
      %v635 = vpop.permute.xlu0 %634
      %638 = vset.pattern.permute.xlu0 0
      %639 = vperm.xlu0 %638, %v541
      %v640 = vpop.permute.xlu0 %639
      %643 = vset.pattern.permute.xlu0 0
      %644 = vperm.xlu0 %643, %v542
      %v645 = vpop.permute.xlu0 %644
      %648 = vset.pattern.permute.xlu0 0
      %649 = vperm.xlu0 %648, %v543
      %v650 = vpop.permute.xlu0 %649
      %653 = vset.pattern.permute.xlu0 0
      %654 = vperm.xlu0 %653, %v544
      %v655 = vpop.permute.xlu0 %654
      %658 = vset.pattern.permute.xlu0 0
      %659 = vperm.xlu0 %658, %v545
      %v660 = vpop.permute.xlu0 %659
      %663 = vset.pattern.permute.xlu0 0
      %664 = vperm.xlu0 %663, %v546
      %v665 = vpop.permute.xlu0 %664
      %668 = vset.pattern.permute.xlu0 0
      %669 = vperm.xlu0 %668, %v547
      %v670 = vpop.permute.xlu0 %669
      %673 = vset.pattern.permute.xlu0 0
      %674 = vperm.xlu0 %673, %v548
      %v675 = vpop.permute.xlu0 %674
      %678 = vset.pattern.permute.xlu0 0
      %679 = vperm.xlu0 %678, %v549
      %v680 = vpop.permute.xlu0 %679
      %683 = vset.pattern.permute.xlu0 0
      %684 = vperm.xlu0 %683, %v550
      %v685 = vpop.permute.xlu0 %684
      %688 = vset.pattern.permute.xlu0 0
      %689 = vperm.xlu0 %688, %v551
      %v690 = vpop.permute.xlu0 %689
      %693 = vset.pattern.permute.xlu0 0
      %694 = vperm.xlu0 %693, %v552
      %v695 = vpop.permute.xlu0 %694
      %698 = vset.pattern.permute.xlu0 0
      %699 = vperm.xlu0 %698, %v553
      %v700 = vpop.permute.xlu0 %699
      %703 = vset.pattern.permute.xlu0 0
      %704 = vperm.xlu0 %703, %v554
      %v705 = vpop.permute.xlu0 %704
      %708 = vset.pattern.permute.xlu0 0
      %709 = vperm.xlu0 %708, %v555
      %v710 = vpop.permute.xlu0 %709
      %713 = vset.pattern.permute.xlu0 0
      %714 = vperm.xlu0 %713, %v556
      %v715 = vpop.permute.xlu0 %714
      %v717 = vmul.f32 %v560, %v399
      %v718 = vmul.f32 %v565, %v402
      %v719 = vmul.f32 %v570, %v407
      %v720 = vmul.f32 %v575, %v410
      %v721 = vmul.f32 %v580, %v415
      %v722 = vmul.f32 %v585, %v418
      %v723 = vmul.f32 %v590, %v423
      %v724 = vmul.f32 %v595, %v426
      %v725 = vmul.f32 %v600, %v431
      %v726 = vmul.f32 %v605, %v434
      %v727 = vmul.f32 %v610, %v439
      %v728 = vmul.f32 %v615, %v442
      %v729 = vmul.f32 %v620, %v447
      %v730 = vmul.f32 %v625, %v450
      %v731 = vmul.f32 %v630, %v455
      %v732 = vmul.f32 %v635, %v458
      %v733 = vmul.f32 %v640, %v463
      %v734 = vmul.f32 %v645, %v466
      %v735 = vmul.f32 %v650, %v471
      %v736 = vmul.f32 %v655, %v474
      %v737 = vmul.f32 %v660, %v479
      %v738 = vmul.f32 %v665, %v482
      %v739 = vmul.f32 %v670, %v487
      %v740 = vmul.f32 %v675, %v490
      %v741 = vmul.f32 %v680, %v495
      %v742 = vmul.f32 %v685, %v498
      %v743 = vmul.f32 %v690, %v503
      %v744 = vmul.f32 %v695, %v506
      %v745 = vmul.f32 %v700, %v511
      %v746 = vmul.f32 %v705, %v514
      %v747 = vmul.f32 %v710, %v519
      %v748 = vmul.f32 %v715, %v522
      %v749 = vld [vmem:[%s4] sm:$0x1]
      %v751 = vlaneseq
      %v752 = vshrl.u32 %v751, 7
      %v753 = vsub.s32 0, %v752
      %v754 = vrot.slane %v749, %v753
      %v756 = vadd.f32 %v717, %v754
      %v757 = vadd.f32 %v718, %v754
      %v758 = vadd.f32 %v719, %v754
      %v759 = vadd.f32 %v720, %v754
      %v760 = vadd.f32 %v721, %v754
      %v761 = vadd.f32 %v722, %v754
      %v762 = vadd.f32 %v723, %v754
      %v763 = vadd.f32 %v724, %v754
      %v764 = vadd.f32 %v725, %v754
      %v765 = vadd.f32 %v726, %v754
      %v766 = vadd.f32 %v727, %v754
      %v767 = vadd.f32 %v728, %v754
      %v768 = vadd.f32 %v729, %v754
      %v769 = vadd.f32 %v730, %v754
      %v770 = vadd.f32 %v731, %v754
      %v771 = vadd.f32 %v732, %v754
      %v772 = vadd.f32 %v733, %v754
      %v773 = vadd.f32 %v734, %v754
      %v774 = vadd.f32 %v735, %v754
      %v775 = vadd.f32 %v736, %v754
      %v776 = vadd.f32 %v737, %v754
      %v777 = vadd.f32 %v738, %v754
      %v778 = vadd.f32 %v739, %v754
      %v779 = vadd.f32 %v740, %v754
      %v780 = vadd.f32 %v741, %v754
      %v781 = vadd.f32 %v742, %v754
      %v782 = vadd.f32 %v743, %v754
      %v783 = vadd.f32 %v744, %v754
      %v784 = vadd.f32 %v745, %v754
      %v785 = vadd.f32 %v746, %v754
      %v786 = vadd.f32 %v747, %v754
      %v787 = vadd.f32 %v748, %v754
      %788 = vst [vmem:[%s248] sm:$0xff] %v756
      %789 = vst [vmem:[%s248 + $0x8] sm:$0xff] %v757
      %790 = vst [vmem:[%s248 + $0x10] sm:$0xff] %v758
      %791 = vst [vmem:[%s248 + $0x18] sm:$0xff] %v759
      %792 = vst [vmem:[%s248 + $0x20] sm:$0xff] %v760
      %793 = vst [vmem:[%s248 + $0x28] sm:$0xff] %v761
      %794 = vst [vmem:[%s248 + $0x30] sm:$0xff] %v762
      %795 = vst [vmem:[%s248 + $0x38] sm:$0xff] %v763
      %796 = vst [vmem:[%s248 + $0x40] sm:$0xff] %v764
      %797 = vst [vmem:[%s248 + $0x48] sm:$0xff] %v765
      %798 = vst [vmem:[%s248 + $0x50] sm:$0xff] %v766
      %799 = vst [vmem:[%s248 + $0x58] sm:$0xff] %v767
      %800 = vst [vmem:[%s248 + $0x60] sm:$0xff] %v768
      %801 = vst [vmem:[%s248 + $0x68] sm:$0xff] %v769
      %802 = vst [vmem:[%s248 + $0x70] sm:$0xff] %v770
      %803 = vst [vmem:[%s248 + $0x78] sm:$0xff] %v771
      %804 = vst [vmem:[%s248 + $0x80] sm:$0xff] %v772
      %805 = vst [vmem:[%s248 + $0x88] sm:$0xff] %v773
      %806 = vst [vmem:[%s248 + $0x90] sm:$0xff] %v774
      %807 = vst [vmem:[%s248 + $0x98] sm:$0xff] %v775
      %808 = vst [vmem:[%s248 + $0xa0] sm:$0xff] %v776
      %809 = vst [vmem:[%s248 + $0xa8] sm:$0xff] %v777
      %810 = vst [vmem:[%s248 + $0xb0] sm:$0xff] %v778
      %811 = vst [vmem:[%s248 + $0xb8] sm:$0xff] %v779
      %812 = vst [vmem:[%s248 + $0xc0] sm:$0xff] %v780
      %813 = vst [vmem:[%s248 + $0xc8] sm:$0xff] %v781
      %814 = vst [vmem:[%s248 + $0xd0] sm:$0xff] %v782
      %815 = vst [vmem:[%s248 + $0xd8] sm:$0xff] %v783
      %816 = vst [vmem:[%s248 + $0xe0] sm:$0xff] %v784
      %817 = vst [vmem:[%s248 + $0xe8] sm:$0xff] %v785
      %818 = vst [vmem:[%s248 + $0xf0] sm:$0xff] %v786
      %819 = vst [vmem:[%s248 + $0xf8] sm:$0xff] %v787
      %s820 = smul.u32 32, %s16
      %p821 = scmp.lt.s32.totalorder %s820, 95
      %s822 = scalar_select %p821, %s820, 95
      %s823 = smul.addr %s822, 8
      %s824 = scalar_lea.vmem %s5, %s823
      // Predicated region
      $region41: #{hypergraph_conv.3} parent=39 // pred_check
        %p825 = pneg %p149
      $region42: #{hypergraph_conv.3} parent=39 // pred_check_branch
        %827 = sbr.rel (%p825) target = $region44
      $region43: #{hypergraph_conv.3} parent=39 // pred_region
        %s828 = smul.u32 32, %s16
      $region44: #{hypergraph_conv.3} parent=39 // pred_fallthru
        _
    $region40: #{hypergraph_conv.3} parent=5 // pred_fallthru
      _
    %p829 = scmp.le.s32.totalorder 2, %s11
    // Predicated region
    $region45: #{hypergraph_conv.3} parent=5 // pred_check
      %p830 = pneg %p829
    $region46: #{hypergraph_conv.3} parent=5 // pred_check_branch
      %832 = sbr.rel (%p830) target = $region48
    $region47: #{hypergraph_conv.3} parent=5 // pred_region
      %s833 = ssub.s32 %s11, 2
      // Predicated region
      $region49: #{hypergraph_conv.3} parent=47 // pred_check
        %p834 = pneg %p155
      $region50: #{hypergraph_conv.3} parent=47 // pred_check_branch
        %836 = sbr.rel (%p834) target = $region52
      $region51: #{hypergraph_conv.3} parent=47 // pred_region
        %s837 = smul.u32 32, %s17
        %p838 = scmp.lt.s32.totalorder %s837, 95
        %s839 = scalar_select %p838, %s837, 95
        %s840 = smul.addr %s839, 8
        %s841 = scalar_lea.vmem %s5, %s840
      $region52: #{hypergraph_conv.3} parent=47 // pred_fallthru
        _
    $region48: #{hypergraph_conv.3} parent=5 // pred_fallthru
      _
  $region6: #{hypergraph_conv.3} parent=0 // loop_footer
    %s15 = sadd.s32 1, %s11
  $region7: #{hypergraph_conv.3} parent=0 // loop_footer_branch
    %10 = sbr.rel target = $region3
  $region8: #{hypergraph_conv.3} parent=0 // loop_exit
    _

// kernel: hypergraph_conv.2
$region0: #{hypergraph_conv.2}
  #allocation0 [shape = 'u32[]', space=smem, size = 0x4, offset = 0x4, fixed_abs, tag = 'smem constant byte address 0x4 - core index']
  #allocation1 [shape = 'u32[144,128]{1,0:T(1,128)}', space=vmem, size = 0x12000, scoped, tag = 'internal scratch']
  #allocation2 [shape = 'f32[128,128]{1,0:T(8,128)}', space=vmem, size = 0x10000, scoped, tag = 'scratch operand']
  #allocation3 [shape = 'f32[1,128]{1,0:T(1,128)}', space=vmem, size = 0x200, scoped, tag = 'scratch operand']
  %s0 = inlined_call_operand.vmem [shape: bf16[768,128], index: 0, kind: input, shape index: {}]
  %s1 = inlined_call_operand.vmem [shape: s8[768,128], index: 1, kind: input, shape index: {}]
  %s2 = inlined_call_operand.vmem [shape: bf16[128,128], index: 2, kind: input, shape index: {}]
  %s3 = inlined_call_operand.vmem [shape: bf16[128,128], index: 3, kind: output, shape index: {0}]
  %s4 = inlined_call_operand.vmem [shape: f32[1,128], index: 4, kind: output, shape index: {1}]
  %s5 = inlined_call_operand.vmem [shape: f32[768,1], index: 5, kind: output, shape index: {2}]
  %6 = xla_tuple %s3, %s4, %s5
  %s7 = sld [smem:[#allocation0]]
  $region69: #{hypergraph_conv.2} parent=0
    _
  %s9 = ssub.s32 1, %s7
  %s10 = scalar_select 0, %s9, %s7
  loop: start=0, step=1, limit=5
  $region2: #{hypergraph_conv.2} parent=0 // loop_pre_header
    _
  $region3: #{hypergraph_conv.2} parent=0 // loop_header
    %s12 = sphi 0, %s16
    %p13 = scmp.ge.s32.totalorder %s12, 5
    %s22 = sphi 0, %s24
    %s25 = sphi 0, %s22
    %s26 = sphi 0, %s25
    %s42 = sphi 0, %s26
    %s48 = sphi 0, %s50
    %s51 = sphi 0, %s48
    %s52 = sphi 0, %s51
    %s68 = sphi 0, %s52
    %s72 = sphi 0, %s72
    %s74 = sphi 0, %s72
    %s75 = sphi 0, %s74
    %s89 = sphi 0, %s75
    %s93 = sphi 0, %s93
    %s95 = sphi 0, %s93
    %s96 = sphi 0, %s95
    %s110 = sphi 0, %s96
    %s114 = sphi 0, %s114
    %s116 = sphi 0, %s114
    %s117 = sphi 0, %s116
    %s131 = sphi 0, %s117
    %s137 = sphi 0, %s139
    %s140 = sphi 0, %s137
    %s141 = sphi 0, %s140
    %s157 = sphi 0, %s141
  $region4: #{hypergraph_conv.2} parent=0 // loop_header_branch
    %15 = sbr.rel (%p13) target = $region8
  $region5: #{hypergraph_conv.2} parent=0 // loop_body
    %s17 = ssub.s32 %s12, 1
    %s18 = ssub.s32 %s12, 2
    %s19 = sadd.s32 %s12, 1
    %s20 = ssub.s32 %s12, %s19
    %p21 = scmp.eq.s32.totalorder %s20, 0
    %s23 = sadd.s32 %s22, 1
    %s24 = scalar_select %p21, %s22, %s23
    %p27 = pneg %p21
    %p28 = scmp.eq.s32.totalorder %s12, 2
    %p29 = por %p27, %p28
    %p30 = scmp.ne.s32.totalorder %s22, %s25
    %p31 = scmp.eq.s32.totalorder %s12, 0
    %p32 = por %p30, %p31
    %p33 = scmp.ne.s32.totalorder %s22, %s25
    %p34 = scmp.eq.s32.totalorder %s17, 2
    %p35 = por %p33, %p34
    %p36 = scmp.ne.s32.totalorder %s25, %s26
    %p37 = scmp.eq.s32.totalorder %s17, 0
    %p38 = por %p36, %p37
    %p39 = scmp.ne.s32.totalorder %s25, %s26
    %p40 = scmp.eq.s32.totalorder %s18, 2
    %p41 = por %p39, %p40
    %p43 = scmp.ne.s32.totalorder %s26, %s42
    %p44 = scmp.eq.s32.totalorder %s18, 0
    %p45 = por %p43, %p44
    %s46 = ssub.s32 %s12, %s19
    %p47 = scmp.eq.s32.totalorder %s46, 0
    %s49 = sadd.s32 %s48, 1
    %s50 = scalar_select %p47, %s48, %s49
    %p53 = pneg %p47
    %p54 = scmp.eq.s32.totalorder %s12, 2
    %p55 = por %p53, %p54
    %p56 = scmp.ne.s32.totalorder %s48, %s51
    %p57 = scmp.eq.s32.totalorder %s12, 0
    %p58 = por %p56, %p57
    %p59 = scmp.ne.s32.totalorder %s48, %s51
    %p60 = scmp.eq.s32.totalorder %s17, 2
    %p61 = por %p59, %p60
    %p62 = scmp.ne.s32.totalorder %s51, %s52
    %p63 = scmp.eq.s32.totalorder %s17, 0
    %p64 = por %p62, %p63
    %p65 = scmp.ne.s32.totalorder %s51, %s52
    %p66 = scmp.eq.s32.totalorder %s18, 2
    %p67 = por %p65, %p66
    %p69 = scmp.ne.s32.totalorder %s52, %s68
    %p70 = scmp.eq.s32.totalorder %s18, 0
    %p71 = por %p69, %p70
    %s73 = sadd.s32 %s72, 1
    %p76 = scmp.eq.s32.totalorder %s12, 2
    %p77 = scmp.ne.s32.totalorder %s72, %s74
    %p78 = scmp.eq.s32.totalorder %s12, 0
    %p79 = por %p77, %p78
    %p80 = scmp.ne.s32.totalorder %s72, %s74
    %p81 = scmp.eq.s32.totalorder %s17, 2
    %p82 = por %p80, %p81
    %p83 = scmp.ne.s32.totalorder %s74, %s75
    %p84 = scmp.eq.s32.totalorder %s17, 0
    %p85 = por %p83, %p84
    %p86 = scmp.ne.s32.totalorder %s74, %s75
    %p87 = scmp.eq.s32.totalorder %s18, 2
    %p88 = por %p86, %p87
    %p90 = scmp.ne.s32.totalorder %s75, %s89
    %p91 = scmp.eq.s32.totalorder %s18, 0
    %p92 = por %p90, %p91
    %s94 = sadd.s32 %s93, 1
    %p97 = scmp.eq.s32.totalorder %s12, 2
    %p98 = scmp.ne.s32.totalorder %s93, %s95
    %p99 = scmp.eq.s32.totalorder %s12, 0
    %p100 = por %p98, %p99
    %p101 = scmp.ne.s32.totalorder %s93, %s95
    %p102 = scmp.eq.s32.totalorder %s17, 2
    %p103 = por %p101, %p102
    %p104 = scmp.ne.s32.totalorder %s95, %s96
    %p105 = scmp.eq.s32.totalorder %s17, 0
    %p106 = por %p104, %p105
    %p107 = scmp.ne.s32.totalorder %s95, %s96
    %p108 = scmp.eq.s32.totalorder %s18, 2
    %p109 = por %p107, %p108
    %p111 = scmp.ne.s32.totalorder %s96, %s110
    %p112 = scmp.eq.s32.totalorder %s18, 0
    %p113 = por %p111, %p112
    %s115 = sadd.s32 %s114, 1
    %p118 = scmp.eq.s32.totalorder %s12, 2
    %p119 = scmp.ne.s32.totalorder %s114, %s116
    %p120 = scmp.eq.s32.totalorder %s12, 0
    %p121 = por %p119, %p120
    %p122 = scmp.ne.s32.totalorder %s114, %s116
    %p123 = scmp.eq.s32.totalorder %s17, 2
    %p124 = por %p122, %p123
    %p125 = scmp.ne.s32.totalorder %s116, %s117
    %p126 = scmp.eq.s32.totalorder %s17, 0
    %p127 = por %p125, %p126
    %p128 = scmp.ne.s32.totalorder %s116, %s117
    %p129 = scmp.eq.s32.totalorder %s18, 2
    %p130 = por %p128, %p129
    %p132 = scmp.ne.s32.totalorder %s117, %s131
    %p133 = scmp.eq.s32.totalorder %s18, 0
    %p134 = por %p132, %p133
    %s135 = ssub.s32 %s12, %s19
    %p136 = scmp.eq.s32.totalorder %s135, 0
    %s138 = sadd.s32 %s137, 1
    %s139 = scalar_select %p136, %s137, %s138
    %p142 = pneg %p136
    %p143 = scmp.eq.s32.totalorder %s12, 2
    %p144 = por %p142, %p143
    %p145 = scmp.ne.s32.totalorder %s137, %s140
    %p146 = scmp.eq.s32.totalorder %s12, 0
    %p147 = por %p145, %p146
    %p148 = scmp.ne.s32.totalorder %s137, %s140
    %p149 = scmp.eq.s32.totalorder %s17, 2
    %p150 = por %p148, %p149
    %p151 = scmp.ne.s32.totalorder %s140, %s141
    %p152 = scmp.eq.s32.totalorder %s17, 0
    %p153 = por %p151, %p152
    %p154 = scmp.ne.s32.totalorder %s140, %s141
    %p155 = scmp.eq.s32.totalorder %s18, 2
    %p156 = por %p154, %p155
    %p158 = scmp.ne.s32.totalorder %s141, %s157
    %p159 = scmp.eq.s32.totalorder %s18, 0
    %p160 = por %p158, %p159
    %p161 = scmp.le.s32.totalorder 1, %s12
    %p162 = scmp.lt.s32.totalorder %s12, 4
    %p163 = pnand %p161, %p162
    %p164 = pneg %p163
    // Predicated region
    $region9: #{hypergraph_conv.2} parent=5 // pred_check
      _
    $region10: #{hypergraph_conv.2} parent=5 // pred_check_branch
      %166 = sbr.rel (%p163) target = $region12
    $region11: #{hypergraph_conv.2} parent=5 // pred_region
      %s167 = ssub.s32 %s12, 1
      // Predicated region
      $region13: #{hypergraph_conv.2} parent=11 // pred_check
        %p168 = pneg %p85
      $region14: #{hypergraph_conv.2} parent=11 // pred_check_branch
        %170 = sbr.rel (%p168) target = $region16
      $region15: #{hypergraph_conv.2} parent=11 // pred_region
        _
      $region16: #{hypergraph_conv.2} parent=11 // pred_fallthru
        _
    $region12: #{hypergraph_conv.2} parent=5 // pred_fallthru
      _
    %p171 = scmp.lt.s32.totalorder %s12, 3
    // Predicated region
    $region17: #{hypergraph_conv.2} parent=5 // pred_check
      %p172 = pneg %p171
    $region18: #{hypergraph_conv.2} parent=5 // pred_check_branch
      %174 = sbr.rel (%p172) target = $region20
    $region19: #{hypergraph_conv.2} parent=5 // pred_region
      // Predicated region
      $region21: #{hypergraph_conv.2} parent=19 // pred_check
        %p175 = pneg %p32
      $region22: #{hypergraph_conv.2} parent=19 // pred_check_branch
        %177 = sbr.rel (%p175) target = $region24
      $region23: #{hypergraph_conv.2} parent=19 // pred_region
        %s178 = smul.u32 32, %s12
        %p179 = scmp.lt.s32.totalorder %s178, 95
        %s180 = scalar_select %p179, %s178, 95
        %s181 = smul.addr %s180, 4
        %s182 = scalar_lea.vmem %s0, %s181
        %s183 = smul.u32 32, %s12
      $region24: #{hypergraph_conv.2} parent=19 // pred_fallthru
        _
      // Predicated region
      $region25: #{hypergraph_conv.2} parent=19 // pred_check
        %p184 = pneg %p58
      $region26: #{hypergraph_conv.2} parent=19 // pred_check_branch
        %186 = sbr.rel (%p184) target = $region28
      $region27: #{hypergraph_conv.2} parent=19 // pred_region
        %s187 = smul.u32 8, %s12
        %p188 = scmp.lt.s32.totalorder %s187, 23
        %s189 = scalar_select %p188, %s187, 23
        %s190 = smul.addr %s189, 8
        %s191 = scalar_lea.vmem %s1, %s190
        %s192 = smul.u32 8, %s12
      $region28: #{hypergraph_conv.2} parent=19 // pred_fallthru
        _
    $region20: #{hypergraph_conv.2} parent=5 // pred_fallthru
      _
    %p193 = scmp.le.s32.totalorder 1, %s12
    %p194 = scmp.lt.s32.totalorder %s12, 4
    %p195 = pnand %p193, %p194
    %p196 = pneg %p195
    // Predicated region
    $region29: #{hypergraph_conv.2} parent=5 // pred_check
      _
    $region30: #{hypergraph_conv.2} parent=5 // pred_check_branch
      %198 = sbr.rel (%p195) target = $region32
    $region31: #{hypergraph_conv.2} parent=5 // pred_region
      %s199 = ssub.s32 %s12, 1
      %s200 = smul.u32 32, %s17
      %p201 = scmp.lt.s32.totalorder %s200, 95
      %s202 = scalar_select %p201, %s200, 95
      %s203 = smul.addr %s202, 4
      %s204 = scalar_lea.vmem %s0, %s203
      %p205 = pneg %p38
      %p206 = pneg %p35
      %s207 = smul.u32 8, %s17
      %p208 = scmp.lt.s32.totalorder %s207, 23
      %s209 = scalar_select %p208, %s207, 23
      %s210 = smul.addr %s209, 8
      %s211 = scalar_lea.vmem %s1, %s210
      %p212 = pneg %p64
      %p213 = pneg %p61
      %p214 = pneg %p85
      %p215 = pneg %p82
      %p216 = pneg %p106
      %p217 = pneg %p103
      %p218 = pneg %p127
      %p219 = pneg %p124
      %p220 = pneg %p153
      %p221 = pneg %p150
      %s222 = smul.u32 32, %s17
      %p223 = scmp.lt.s32.totalorder %s222, 95
      %s224 = scalar_select %p223, %s222, 95
      %s225 = smul.addr %s224, 8
      %s226 = scalar_lea.vmem %s5, %s225
      %s227 = smul.u32 32, %s17
      %p228 = scmp.lt.s32.totalorder %s227, 95
      %s229 = scalar_select %p228, %s227, 95
      %s230 = smul.addr %s229, 4
      %s231 = scalar_lea.vmem %s0, %s230
      %s232 = smul.u32 32, %s17
      %s233 = smul.u32 8, %s17
      %p234 = scmp.lt.s32.totalorder %s233, 23
      %s235 = scalar_select %p234, %s233, 23
      %s236 = smul.addr %s235, 8
      %s237 = scalar_lea.vmem %s1, %s236
      %s238 = smul.u32 8, %s17
      %s239 = smul.u32 32, %s17
      %p240 = scmp.lt.s32.totalorder %s239, 95
      %s241 = scalar_select %p240, %s239, 95
      %s242 = smul.addr %s241, 8
      %s243 = scalar_lea.vmem %s5, %s242
      %s244 = smul.u32 32, %s17
      %p246 = scmp.eq.s32.totalorder %s17, 0
      // Predicated region
      $region33: #{hypergraph_conv.2} parent=31 // pred_check
        %p247 = pneg %p246
      $region34: #{hypergraph_conv.2} parent=31 // pred_check_branch
        %249 = sbr.rel (%p247) target = $region36
      $region35: #{hypergraph_conv.2} parent=31 // pred_region
        %250 = vst [vmem:[#allocation2] sm:$0xff] 0.0
        %251 = vst [vmem:[#allocation2 + $0x8] sm:$0xff] 0.0
        %252 = vst [vmem:[#allocation2 + $0x10] sm:$0xff] 0.0
        %253 = vst [vmem:[#allocation2 + $0x18] sm:$0xff] 0.0
        %254 = vst [vmem:[#allocation2 + $0x20] sm:$0xff] 0.0
        %255 = vst [vmem:[#allocation2 + $0x28] sm:$0xff] 0.0
        %256 = vst [vmem:[#allocation2 + $0x30] sm:$0xff] 0.0
        %257 = vst [vmem:[#allocation2 + $0x38] sm:$0xff] 0.0
        %258 = vst [vmem:[#allocation2 + $0x40] sm:$0xff] 0.0
        %259 = vst [vmem:[#allocation2 + $0x48] sm:$0xff] 0.0
        %260 = vst [vmem:[#allocation2 + $0x50] sm:$0xff] 0.0
        %261 = vst [vmem:[#allocation2 + $0x58] sm:$0xff] 0.0
        %262 = vst [vmem:[#allocation2 + $0x60] sm:$0xff] 0.0
        %263 = vst [vmem:[#allocation2 + $0x68] sm:$0xff] 0.0
        %264 = vst [vmem:[#allocation2 + $0x70] sm:$0xff] 0.0
        %265 = vst [vmem:[#allocation2 + $0x78] sm:$0xff] 0.0
        %266 = vst [vmem:[#allocation3] sm:$0x1] 0.0
      $region36: #{hypergraph_conv.2} parent=31 // pred_fallthru
        _
      %v267 = vld [vmem:[%s237] sm:$0xff]
      %v268 = vld [vmem:[%s237 + $0x8] sm:$0xff]
      %v269 = vld [vmem:[%s237 + $0x10] sm:$0xff]
      %v270 = vld [vmem:[%s237 + $0x18] sm:$0xff]
      %v271 = vld [vmem:[%s237 + $0x20] sm:$0xff]
      %v272 = vld [vmem:[%s237 + $0x28] sm:$0xff]
      %v273 = vld [vmem:[%s237 + $0x30] sm:$0xff]
      %v274 = vld [vmem:[%s237 + $0x38] sm:$0xff]
      %v275 = vunpack.c.0.s8 %v267
      %v276 = vunpack.c.1.s8 %v267
      %v277 = vunpack.c.2.s8 %v267
      %v278 = vunpack.c.3.s8 %v267
      %v279 = vunpack.c.0.s8 %v268
      %v280 = vunpack.c.1.s8 %v268
      %v281 = vunpack.c.2.s8 %v268
      %v282 = vunpack.c.3.s8 %v268
      %v283 = vunpack.c.0.s8 %v269
      %v284 = vunpack.c.1.s8 %v269
      %v285 = vunpack.c.2.s8 %v269
      %v286 = vunpack.c.3.s8 %v269
      %v287 = vunpack.c.0.s8 %v270
      %v288 = vunpack.c.1.s8 %v270
      %v289 = vunpack.c.2.s8 %v270
      %v290 = vunpack.c.3.s8 %v270
      %v291 = vunpack.c.0.s8 %v271
      %v292 = vunpack.c.1.s8 %v271
      %v293 = vunpack.c.2.s8 %v271
      %v294 = vunpack.c.3.s8 %v271
      %v295 = vunpack.c.0.s8 %v272
      %v296 = vunpack.c.1.s8 %v272
      %v297 = vunpack.c.2.s8 %v272
      %v298 = vunpack.c.3.s8 %v272
      %v299 = vunpack.c.0.s8 %v273
      %v300 = vunpack.c.1.s8 %v273
      %v301 = vunpack.c.2.s8 %v273
      %v302 = vunpack.c.3.s8 %v273
      %v303 = vunpack.c.0.s8 %v274
      %v304 = vunpack.c.1.s8 %v274
      %v305 = vunpack.c.2.s8 %v274
      %v306 = vunpack.c.3.s8 %v274
      %v307 = vcvt.s32.f32 %v275
      %v308 = vcvt.s32.f32 %v276
      %v309 = vcvt.s32.f32 %v277
      %v310 = vcvt.s32.f32 %v278
      %v311 = vcvt.s32.f32 %v279
      %v312 = vcvt.s32.f32 %v280
      %v313 = vcvt.s32.f32 %v281
      %v314 = vcvt.s32.f32 %v282
      %v315 = vcvt.s32.f32 %v283
      %v316 = vcvt.s32.f32 %v284
      %v317 = vcvt.s32.f32 %v285
      %v318 = vcvt.s32.f32 %v286
      %v319 = vcvt.s32.f32 %v287
      %v320 = vcvt.s32.f32 %v288
      %v321 = vcvt.s32.f32 %v289
      %v322 = vcvt.s32.f32 %v290
      %v323 = vcvt.s32.f32 %v291
      %v324 = vcvt.s32.f32 %v292
      %v325 = vcvt.s32.f32 %v293
      %v326 = vcvt.s32.f32 %v294
      %v327 = vcvt.s32.f32 %v295
      %v328 = vcvt.s32.f32 %v296
      %v329 = vcvt.s32.f32 %v297
      %v330 = vcvt.s32.f32 %v298
      %v331 = vcvt.s32.f32 %v299
      %v332 = vcvt.s32.f32 %v300
      %v333 = vcvt.s32.f32 %v301
      %v334 = vcvt.s32.f32 %v302
      %v335 = vcvt.s32.f32 %v303
      %v336 = vcvt.s32.f32 %v304
      %v337 = vcvt.s32.f32 %v305
      %v338 = vcvt.s32.f32 %v306
      %339 = vadd.xlane.f32.xlu0 %v307
      %v340 = vpop.xlane.xlu0 %339
      %341 = vadd.xlane.f32.xlu0 %v308
      %v342 = vpop.xlane.xlu0 %341
      %343 = vadd.xlane.f32.xlu0 %v309
      %v344 = vpop.xlane.xlu0 %343
      %345 = vadd.xlane.f32.xlu0 %v310
      %v346 = vpop.xlane.xlu0 %345
      %347 = vadd.xlane.f32.xlu0 %v311
      %v348 = vpop.xlane.xlu0 %347
      %349 = vadd.xlane.f32.xlu0 %v312
      %v350 = vpop.xlane.xlu0 %349
      %351 = vadd.xlane.f32.xlu0 %v313
      %v352 = vpop.xlane.xlu0 %351
      %353 = vadd.xlane.f32.xlu0 %v314
      %v354 = vpop.xlane.xlu0 %353
      %355 = vadd.xlane.f32.xlu0 %v315
      %v356 = vpop.xlane.xlu0 %355
      %357 = vadd.xlane.f32.xlu0 %v316
      %v358 = vpop.xlane.xlu0 %357
      %359 = vadd.xlane.f32.xlu0 %v317
      %v360 = vpop.xlane.xlu0 %359
      %361 = vadd.xlane.f32.xlu0 %v318
      %v362 = vpop.xlane.xlu0 %361
      %363 = vadd.xlane.f32.xlu0 %v319
      %v364 = vpop.xlane.xlu0 %363
      %365 = vadd.xlane.f32.xlu0 %v320
      %v366 = vpop.xlane.xlu0 %365
      %367 = vadd.xlane.f32.xlu0 %v321
      %v368 = vpop.xlane.xlu0 %367
      %369 = vadd.xlane.f32.xlu0 %v322
      %v370 = vpop.xlane.xlu0 %369
      %371 = vadd.xlane.f32.xlu0 %v323
      %v372 = vpop.xlane.xlu0 %371
      %373 = vadd.xlane.f32.xlu0 %v324
      %v374 = vpop.xlane.xlu0 %373
      %375 = vadd.xlane.f32.xlu0 %v325
      %v376 = vpop.xlane.xlu0 %375
      %377 = vadd.xlane.f32.xlu0 %v326
      %v378 = vpop.xlane.xlu0 %377
      %379 = vadd.xlane.f32.xlu0 %v327
      %v380 = vpop.xlane.xlu0 %379
      %381 = vadd.xlane.f32.xlu0 %v328
      %v382 = vpop.xlane.xlu0 %381
      %383 = vadd.xlane.f32.xlu0 %v329
      %v384 = vpop.xlane.xlu0 %383
      %385 = vadd.xlane.f32.xlu0 %v330
      %v386 = vpop.xlane.xlu0 %385
      %387 = vadd.xlane.f32.xlu0 %v331
      %v388 = vpop.xlane.xlu0 %387
      %389 = vadd.xlane.f32.xlu0 %v332
      %v390 = vpop.xlane.xlu0 %389
      %391 = vadd.xlane.f32.xlu0 %v333
      %v392 = vpop.xlane.xlu0 %391
      %393 = vadd.xlane.f32.xlu0 %v334
      %v394 = vpop.xlane.xlu0 %393
      %395 = vadd.xlane.f32.xlu0 %v335
      %v396 = vpop.xlane.xlu0 %395
      %397 = vadd.xlane.f32.xlu0 %v336
      %v398 = vpop.xlane.xlu0 %397
      %399 = vadd.xlane.f32.xlu0 %v337
      %v400 = vpop.xlane.xlu0 %399
      %401 = vadd.xlane.f32.xlu0 %v338
      %v402 = vpop.xlane.xlu0 %401
      %v403 = vld [vmem:[#allocation3] sm:$0x1]
      %v404 = vadd.f32 %v307, %v308
      %v405 = vadd.f32 %v404, %v309
      %v406 = vadd.f32 %v405, %v310
      %v407 = vadd.f32 %v406, %v311
      %v408 = vadd.f32 %v407, %v312
      %v409 = vadd.f32 %v408, %v313
      %v410 = vadd.f32 %v409, %v314
      %v411 = vadd.f32 %v410, %v315
      %v412 = vadd.f32 %v411, %v316
      %v413 = vadd.f32 %v412, %v317
      %v414 = vadd.f32 %v413, %v318
      %v415 = vadd.f32 %v414, %v319
      %v416 = vadd.f32 %v415, %v320
      %v417 = vadd.f32 %v416, %v321
      %v418 = vadd.f32 %v417, %v322
      %v419 = vadd.f32 %v418, %v323
      %v420 = vadd.f32 %v419, %v324
      %v421 = vadd.f32 %v420, %v325
      %v422 = vadd.f32 %v421, %v326
      %v423 = vadd.f32 %v422, %v327
      %v424 = vadd.f32 %v423, %v328
      %v425 = vadd.f32 %v424, %v329
      %v426 = vadd.f32 %v425, %v330
      %v427 = vadd.f32 %v426, %v331
      %v428 = vadd.f32 %v427, %v332
      %v429 = vadd.f32 %v428, %v333
      %v430 = vadd.f32 %v429, %v334
      %v431 = vadd.f32 %v430, %v335
      %v432 = vadd.f32 %v431, %v336
      %v433 = vadd.f32 %v432, %v337
      %v434 = vadd.f32 %v433, %v338
      %v435 = vrot.slane %v434, 4
      %v436 = vadd.f32 %v434, %v435
      %v437 = vrot.slane %v436, 2
      %v438 = vadd.f32 %v436, %v437
      %v439 = vrot.slane %v438, 1
      %v440 = vadd.f32 %v438, %v439
      %v441 = vadd.f32 %v403, %v440
      %442 = vst [vmem:[#allocation3] sm:$0x1] %v441
      %v443 = vadd.f32 %v340, 1e-05
      %v444 = vadd.f32 %v342, 1e-05
      %v445 = vadd.f32 %v344, 1e-05
      %v446 = vadd.f32 %v346, 1e-05
      %v447 = vadd.f32 %v348, 1e-05
      %v448 = vadd.f32 %v350, 1e-05
      %v449 = vadd.f32 %v352, 1e-05
      %v450 = vadd.f32 %v354, 1e-05
      %v451 = vadd.f32 %v356, 1e-05
      %v452 = vadd.f32 %v358, 1e-05
      %v453 = vadd.f32 %v360, 1e-05
      %v454 = vadd.f32 %v362, 1e-05
      %v455 = vadd.f32 %v364, 1e-05
      %v456 = vadd.f32 %v366, 1e-05
      %v457 = vadd.f32 %v368, 1e-05
      %v458 = vadd.f32 %v370, 1e-05
      %v459 = vadd.f32 %v372, 1e-05
      %v460 = vadd.f32 %v374, 1e-05
      %v461 = vadd.f32 %v376, 1e-05
      %v462 = vadd.f32 %v378, 1e-05
      %v463 = vadd.f32 %v380, 1e-05
      %v464 = vadd.f32 %v382, 1e-05
      %v465 = vadd.f32 %v384, 1e-05
      %v466 = vadd.f32 %v386, 1e-05
      %v467 = vadd.f32 %v388, 1e-05
      %v468 = vadd.f32 %v390, 1e-05
      %v469 = vadd.f32 %v392, 1e-05
      %v470 = vadd.f32 %v394, 1e-05
      %v471 = vadd.f32 %v396, 1e-05
      %v472 = vadd.f32 %v398, 1e-05
      %v473 = vadd.f32 %v400, 1e-05
      %v474 = vadd.f32 %v402, 1e-05
      %v475 = vrsqrt.pop %v443
      %v476 = vrsqrt.pop %v444
      %v477 = vrsqrt.pop %v445
      %v478 = vrsqrt.pop %v446
      %v479 = vrsqrt.pop %v447
      %v480 = vrsqrt.pop %v448
      %v481 = vrsqrt.pop %v449
      %v482 = vrsqrt.pop %v450
      %v483 = vrsqrt.pop %v451
      %v484 = vrsqrt.pop %v452
      %v485 = vrsqrt.pop %v453
      %v486 = vrsqrt.pop %v454
      %v487 = vrsqrt.pop %v455
      %v488 = vrsqrt.pop %v456
      %v489 = vrsqrt.pop %v457
      %v490 = vrsqrt.pop %v458
      %v491 = vrsqrt.pop %v459
      %v492 = vrsqrt.pop %v460
      %v493 = vrsqrt.pop %v461
      %v494 = vrsqrt.pop %v462
      %v495 = vrsqrt.pop %v463
      %v496 = vrsqrt.pop %v464
      %v497 = vrsqrt.pop %v465
      %v498 = vrsqrt.pop %v466
      %v499 = vrsqrt.pop %v467
      %v500 = vrsqrt.pop %v468
      %v501 = vrsqrt.pop %v469
      %v502 = vrsqrt.pop %v470
      %v503 = vrsqrt.pop %v471
      %v504 = vrsqrt.pop %v472
      %v505 = vrsqrt.pop %v473
      %v506 = vrsqrt.pop %v474
      %vm507 = vcmask 7168
      %508 = vst.msk [vmem:[%s243] sm:$0xff] %vm507, %v475
      %509 = vst.msk [vmem:[%s243 + $0x8] sm:$0xff] %vm507, %v476
      %510 = vst.msk [vmem:[%s243 + $0x10] sm:$0xff] %vm507, %v477
      %511 = vst.msk [vmem:[%s243 + $0x18] sm:$0xff] %vm507, %v478
      %512 = vst.msk [vmem:[%s243 + $0x20] sm:$0xff] %vm507, %v479
      %513 = vst.msk [vmem:[%s243 + $0x28] sm:$0xff] %vm507, %v480
      %514 = vst.msk [vmem:[%s243 + $0x30] sm:$0xff] %vm507, %v481
      %515 = vst.msk [vmem:[%s243 + $0x38] sm:$0xff] %vm507, %v482
      %516 = vst.msk [vmem:[%s243 + $0x40] sm:$0xff] %vm507, %v483
      %517 = vst.msk [vmem:[%s243 + $0x48] sm:$0xff] %vm507, %v484
      %518 = vst.msk [vmem:[%s243 + $0x50] sm:$0xff] %vm507, %v485
      %519 = vst.msk [vmem:[%s243 + $0x58] sm:$0xff] %vm507, %v486
      %520 = vst.msk [vmem:[%s243 + $0x60] sm:$0xff] %vm507, %v487
      %521 = vst.msk [vmem:[%s243 + $0x68] sm:$0xff] %vm507, %v488
      %522 = vst.msk [vmem:[%s243 + $0x70] sm:$0xff] %vm507, %v489
      %523 = vst.msk [vmem:[%s243 + $0x78] sm:$0xff] %vm507, %v490
      %524 = vst.msk [vmem:[%s243 + $0x80] sm:$0xff] %vm507, %v491
      %525 = vst.msk [vmem:[%s243 + $0x88] sm:$0xff] %vm507, %v492
      %526 = vst.msk [vmem:[%s243 + $0x90] sm:$0xff] %vm507, %v493
      %527 = vst.msk [vmem:[%s243 + $0x98] sm:$0xff] %vm507, %v494
      %528 = vst.msk [vmem:[%s243 + $0xa0] sm:$0xff] %vm507, %v495
      %529 = vst.msk [vmem:[%s243 + $0xa8] sm:$0xff] %vm507, %v496
      %530 = vst.msk [vmem:[%s243 + $0xb0] sm:$0xff] %vm507, %v497
      %531 = vst.msk [vmem:[%s243 + $0xb8] sm:$0xff] %vm507, %v498
      %532 = vst.msk [vmem:[%s243 + $0xc0] sm:$0xff] %vm507, %v499
      %533 = vst.msk [vmem:[%s243 + $0xc8] sm:$0xff] %vm507, %v500
      %534 = vst.msk [vmem:[%s243 + $0xd0] sm:$0xff] %vm507, %v501
      %535 = vst.msk [vmem:[%s243 + $0xd8] sm:$0xff] %vm507, %v502
      %536 = vst.msk [vmem:[%s243 + $0xe0] sm:$0xff] %vm507, %v503
      %537 = vst.msk [vmem:[%s243 + $0xe8] sm:$0xff] %vm507, %v504
      %538 = vst.msk [vmem:[%s243 + $0xf0] sm:$0xff] %vm507, %v505
      %539 = vst.msk [vmem:[%s243 + $0xf8] sm:$0xff] %vm507, %v506
      %v540 = vld [vmem:[%s231] sm:$0xf]
      %v541 = vld [vmem:[%s231 + $0x4] sm:$0xf]
      %v542 = vld [vmem:[%s231 + $0x8] sm:$0xf]
      %v543 = vld [vmem:[%s231 + $0xc] sm:$0xf]
      %v544 = vld [vmem:[%s231 + $0x10] sm:$0xf]
      %v545 = vld [vmem:[%s231 + $0x14] sm:$0xf]
      %v546 = vld [vmem:[%s231 + $0x18] sm:$0xf]
      %v547 = vld [vmem:[%s231 + $0x1c] sm:$0xf]
      %v548 = vld [vmem:[%s231 + $0x20] sm:$0xf]
      %v549 = vld [vmem:[%s231 + $0x24] sm:$0xf]
      %v550 = vld [vmem:[%s231 + $0x28] sm:$0xf]
      %v551 = vld [vmem:[%s231 + $0x2c] sm:$0xf]
      %v552 = vld [vmem:[%s231 + $0x30] sm:$0xf]
      %v553 = vld [vmem:[%s231 + $0x34] sm:$0xf]
      %v554 = vld [vmem:[%s231 + $0x38] sm:$0xf]
      %v555 = vld [vmem:[%s231 + $0x3c] sm:$0xf]
      %v556 = vld [vmem:[%s231 + $0x40] sm:$0xf]
      %v557 = vld [vmem:[%s231 + $0x44] sm:$0xf]
      %v558 = vld [vmem:[%s231 + $0x48] sm:$0xf]
      %v559 = vld [vmem:[%s231 + $0x4c] sm:$0xf]
      %v560 = vld [vmem:[%s231 + $0x50] sm:$0xf]
      %v561 = vld [vmem:[%s231 + $0x54] sm:$0xf]
      %v562 = vld [vmem:[%s231 + $0x58] sm:$0xf]
      %v563 = vld [vmem:[%s231 + $0x5c] sm:$0xf]
      %v564 = vld [vmem:[%s231 + $0x60] sm:$0xf]
      %v565 = vld [vmem:[%s231 + $0x64] sm:$0xf]
      %v566 = vld [vmem:[%s231 + $0x68] sm:$0xf]
      %v567 = vld [vmem:[%s231 + $0x6c] sm:$0xf]
      %v568 = vld [vmem:[%s231 + $0x70] sm:$0xf]
      %v569 = vld [vmem:[%s231 + $0x74] sm:$0xf]
      %v570 = vld [vmem:[%s231 + $0x78] sm:$0xf]
      %v571 = vld [vmem:[%s231 + $0x7c] sm:$0xf]
      %v572 = vld [vmem:[%s2] sm:$0xf]
      %v573 = vld [vmem:[%s2 + $0x4] sm:$0xf]
      %v574 = vld [vmem:[%s2 + $0x8] sm:$0xf]
      %v575 = vld [vmem:[%s2 + $0xc] sm:$0xf]
      %v576 = vld [vmem:[%s2 + $0x10] sm:$0xf]
      %v577 = vld [vmem:[%s2 + $0x14] sm:$0xf]
      %v578 = vld [vmem:[%s2 + $0x18] sm:$0xf]
      %v579 = vld [vmem:[%s2 + $0x1c] sm:$0xf]
      %v580 = vld [vmem:[%s2 + $0x20] sm:$0xf]
      %v581 = vld [vmem:[%s2 + $0x24] sm:$0xf]
      %v582 = vld [vmem:[%s2 + $0x28] sm:$0xf]
      %v583 = vld [vmem:[%s2 + $0x2c] sm:$0xf]
      %v584 = vld [vmem:[%s2 + $0x30] sm:$0xf]
      %v585 = vld [vmem:[%s2 + $0x34] sm:$0xf]
      %v586 = vld [vmem:[%s2 + $0x38] sm:$0xf]
      %v587 = vld [vmem:[%s2 + $0x3c] sm:$0xf]
      %v620 = vunpack.c.l.b16 %v540
      %v621 = vunpack.c.l.b16 %v541
      %v622 = vunpack.c.l.b16 %v542
      %v623 = vunpack.c.l.b16 %v543
      %v624 = vunpack.c.l.b16 %v544
      %v625 = vunpack.c.l.b16 %v545
      %v626 = vunpack.c.l.b16 %v546
      %v627 = vunpack.c.l.b16 %v547
      %v628 = vunpack.c.l.b16 %v548
      %v629 = vunpack.c.l.b16 %v549
      %v630 = vunpack.c.l.b16 %v550
      %v631 = vunpack.c.l.b16 %v551
      %v632 = vunpack.c.l.b16 %v552
      %v633 = vunpack.c.l.b16 %v553
      %v634 = vunpack.c.l.b16 %v554
      %v635 = vunpack.c.l.b16 %v555
      %v636 = vunpack.c.l.b16 %v556
      %v637 = vunpack.c.l.b16 %v557
      %v638 = vunpack.c.l.b16 %v558
      %v639 = vunpack.c.l.b16 %v559
      %v640 = vunpack.c.l.b16 %v560
      %v641 = vunpack.c.l.b16 %v561
      %v642 = vunpack.c.l.b16 %v562
      %v643 = vunpack.c.l.b16 %v563
      %v644 = vunpack.c.l.b16 %v564
      %v645 = vunpack.c.l.b16 %v565
      %v646 = vunpack.c.l.b16 %v566
      %v647 = vunpack.c.l.b16 %v567
      %v648 = vunpack.c.l.b16 %v568
      %v649 = vunpack.c.l.b16 %v569
      %v650 = vunpack.c.l.b16 %v570
      %v651 = vunpack.c.l.b16 %v571
      %v652 = vpack.c.b16 %v621, %v620
      %v653 = vpack.c.b16 %v623, %v622
      %v654 = vpack.c.b16 %v625, %v624
      %v655 = vpack.c.b16 %v627, %v626
      %v656 = vpack.c.b16 %v629, %v628
      %v657 = vpack.c.b16 %v631, %v630
      %v658 = vpack.c.b16 %v633, %v632
      %v659 = vpack.c.b16 %v635, %v634
      %v660 = vpack.c.b16 %v637, %v636
      %v661 = vpack.c.b16 %v639, %v638
      %v662 = vpack.c.b16 %v641, %v640
      %v663 = vpack.c.b16 %v643, %v642
      %v664 = vpack.c.b16 %v645, %v644
      %v665 = vpack.c.b16 %v647, %v646
      %v666 = vpack.c.b16 %v649, %v648
      %v667 = vpack.c.b16 %v651, %v650
      %v700 = vunpack.c.l.b16 %v572
      %v701 = vunpack.c.l.b16 %v573
      %v702 = vunpack.c.l.b16 %v574
      %v703 = vunpack.c.l.b16 %v575
      %v704 = vunpack.c.l.b16 %v576
      %v705 = vunpack.c.l.b16 %v577
      %v706 = vunpack.c.l.b16 %v578
      %v707 = vunpack.c.l.b16 %v579
      %v708 = vunpack.c.l.b16 %v580
      %v709 = vunpack.c.l.b16 %v581
      %v710 = vunpack.c.l.b16 %v582
      %v711 = vunpack.c.l.b16 %v583
      %v712 = vunpack.c.l.b16 %v584
      %v713 = vunpack.c.l.b16 %v585
      %v714 = vunpack.c.l.b16 %v586
      %v715 = vunpack.c.l.b16 %v587
      %v716 = vpack.c.b16 %v701, %v700
      %v717 = vpack.c.b16 %v703, %v702
      %v718 = vpack.c.b16 %v705, %v704
      %v719 = vpack.c.b16 %v707, %v706
      %v720 = vpack.c.b16 %v709, %v708
      %v721 = vpack.c.b16 %v711, %v710
      %v722 = vpack.c.b16 %v713, %v712
      %v723 = vpack.c.b16 %v715, %v714
      %732 = vmatprep.subr.bf16.mxu0 0
      %733 = vmatpush1.bf16.msra.mxu0 %v716
      %734 = vmatprep.subr.bf16.mxu0 0
      %735 = vmatpush1.bf16.msra.mxu0 %v717
      %736 = vmatprep.subr.bf16.mxu0 0
      %737 = vmatpush1.bf16.msra.mxu0 %v718
      %738 = vmatprep.subr.bf16.mxu0 0
      %739 = vmatpush1.bf16.msra.mxu0 %v719
      %740 = vmatprep.subr.bf16.mxu0 0
      %741 = vmatpush1.bf16.msra.mxu0 %v720
      %742 = vmatprep.subr.bf16.mxu0 0
      %743 = vmatpush1.bf16.msra.mxu0 %v721
      %744 = vmatprep.subr.bf16.mxu0 0
      %745 = vmatpush1.bf16.msra.mxu0 %v722
      %746 = vmatprep.subr.bf16.mxu0 0
      %747 = vmatpush1.bf16.msra.mxu0 %v723
      %748 = vmatprep.subr.bf16.mxu0 0
      %749 = vmatpush1.bf16.msra.mxu0 0
      %750 = vmatprep.subr.bf16.mxu0 0
      %751 = vmatpush1.bf16.msra.mxu0 0
      %752 = vmatprep.subr.bf16.mxu0 0
      %753 = vmatpush1.bf16.msra.mxu0 0
      %754 = vmatprep.subr.bf16.mxu0 0
      %755 = vmatpush1.bf16.msra.mxu0 0
      %756 = vmatprep.subr.bf16.mxu0 0
      %757 = vmatpush1.bf16.msra.mxu0 0
      %758 = vmatprep.subr.bf16.mxu0 0
      %759 = vmatpush1.bf16.msra.mxu0 0
      %760 = vmatprep.subr.bf16.mxu0 0
      %761 = vmatpush1.bf16.msra.mxu0 0
      %762 = vmatprep.subr.bf16.mxu0 0
      %763 = vmatpush1.bf16.msra.mxu0 0
      %764 = vmatprep.mubr.bf16.mxu0 0
      %765 = vmatmul.mubr.bf16.gmra.mrb[0].mxu0 %v652
      %v766 = vpop.f32.mrb[0].mxu0
      %v767 = vadd.f32 0.0, %v766
      %v768 = vpop.f32.mrb[0].mxu0
      %v769 = vpop.f32.mrb[0].mxu0
      %v770 = vadd.f32 0.0, %v769
      %v771 = vpop.f32.mrb[0].mxu0
      %772 = vmatprep.mubr.bf16.mxu0 0
      %773 = vmatmul.mubr.bf16.gmra.mrb[0].mxu0 %v653
      %v774 = vpop.f32.mrb[0].mxu0
      %v775 = vadd.f32 0.0, %v774
      %v776 = vpop.f32.mrb[0].mxu0
      %v777 = vpop.f32.mrb[0].mxu0
      %v778 = vadd.f32 0.0, %v777
      %v779 = vpop.f32.mrb[0].mxu0
      %780 = vmatprep.mubr.bf16.mxu0 0
      %781 = vmatmul.mubr.bf16.gmra.mrb[0].mxu0 %v654
      %v782 = vpop.f32.mrb[0].mxu0
      %v783 = vadd.f32 0.0, %v782
      %v784 = vpop.f32.mrb[0].mxu0
      %v785 = vpop.f32.mrb[0].mxu0
      %v786 = vadd.f32 0.0, %v785
      %v787 = vpop.f32.mrb[0].mxu0
      %788 = vmatprep.mubr.bf16.mxu0 0
      %789 = vmatmul.mubr.bf16.gmra.mrb[0].mxu0 %v655
      %v790 = vpop.f32.mrb[0].mxu0
      %v791 = vadd.f32 0.0, %v790
      %v792 = vpop.f32.mrb[0].mxu0
      %v793 = vpop.f32.mrb[0].mxu0
      %v794 = vadd.f32 0.0, %v793
      %v795 = vpop.f32.mrb[0].mxu0
      %796 = vmatprep.mubr.bf16.mxu0 0
      %797 = vmatmul.mubr.bf16.gmra.mrb[0].mxu0 %v656
      %v798 = vpop.f32.mrb[0].mxu0
      %v799 = vadd.f32 0.0, %v798
      %v800 = vpop.f32.mrb[0].mxu0
      %v801 = vpop.f32.mrb[0].mxu0
      %v802 = vadd.f32 0.0, %v801
      %v803 = vpop.f32.mrb[0].mxu0
      %804 = vmatprep.mubr.bf16.mxu0 0
      %805 = vmatmul.mubr.bf16.gmra.mrb[0].mxu0 %v657
      %v806 = vpop.f32.mrb[0].mxu0
      %v807 = vadd.f32 0.0, %v806
      %v808 = vpop.f32.mrb[0].mxu0
      %v809 = vpop.f32.mrb[0].mxu0
      %v810 = vadd.f32 0.0, %v809
      %v811 = vpop.f32.mrb[0].mxu0
      %812 = vmatprep.mubr.bf16.mxu0 0
      %813 = vmatmul.mubr.bf16.gmra.mrb[0].mxu0 %v658
      %v814 = vpop.f32.mrb[0].mxu0
      %v815 = vadd.f32 0.0, %v814
      %v816 = vpop.f32.mrb[0].mxu0
      %v817 = vpop.f32.mrb[0].mxu0
      %v818 = vadd.f32 0.0, %v817
      %v819 = vpop.f32.mrb[0].mxu0
      %820 = vmatprep.mubr.bf16.mxu0 0
      %821 = vmatmul.mubr.bf16.gmra.mrb[0].mxu0 %v659
      %v822 = vpop.f32.mrb[0].mxu0
      %v823 = vadd.f32 0.0, %v822
      %v824 = vpop.f32.mrb[0].mxu0
      %v825 = vpop.f32.mrb[0].mxu0
      %v826 = vadd.f32 0.0, %v825
      %v827 = vpop.f32.mrb[0].mxu0
      %828 = vmatprep.mubr.bf16.mxu0 0
      %829 = vmatmul.mubr.bf16.gmra.mrb[0].mxu0 %v660
      %v830 = vpop.f32.mrb[0].mxu0
      %v831 = vadd.f32 0.0, %v830
      %v832 = vpop.f32.mrb[0].mxu0
      %v833 = vpop.f32.mrb[0].mxu0
      %v834 = vadd.f32 0.0, %v833
      %v835 = vpop.f32.mrb[0].mxu0
      %836 = vmatprep.mubr.bf16.mxu0 0
      %837 = vmatmul.mubr.bf16.gmra.mrb[0].mxu0 %v661
      %v838 = vpop.f32.mrb[0].mxu0
      %v839 = vadd.f32 0.0, %v838
      %v840 = vpop.f32.mrb[0].mxu0
      %v841 = vpop.f32.mrb[0].mxu0
      %v842 = vadd.f32 0.0, %v841
      %v843 = vpop.f32.mrb[0].mxu0
      %844 = vmatprep.mubr.bf16.mxu0 0
      %845 = vmatmul.mubr.bf16.gmra.mrb[0].mxu0 %v662
      %v846 = vpop.f32.mrb[0].mxu0
      %v847 = vadd.f32 0.0, %v846
      %v848 = vpop.f32.mrb[0].mxu0
      %v849 = vpop.f32.mrb[0].mxu0
      %v850 = vadd.f32 0.0, %v849
      %v851 = vpop.f32.mrb[0].mxu0
      %852 = vmatprep.mubr.bf16.mxu0 0
      %853 = vmatmul.mubr.bf16.gmra.mrb[0].mxu0 %v663
      %v854 = vpop.f32.mrb[0].mxu0
      %v855 = vadd.f32 0.0, %v854
      %v856 = vpop.f32.mrb[0].mxu0
      %v857 = vpop.f32.mrb[0].mxu0
      %v858 = vadd.f32 0.0, %v857
      %v859 = vpop.f32.mrb[0].mxu0
      %860 = vmatprep.mubr.bf16.mxu0 0
      %861 = vmatmul.mubr.bf16.gmra.mrb[0].mxu0 %v664
      %v862 = vpop.f32.mrb[0].mxu0
      %v863 = vadd.f32 0.0, %v862
      %v864 = vpop.f32.mrb[0].mxu0
      %v865 = vpop.f32.mrb[0].mxu0
      %v866 = vadd.f32 0.0, %v865
      %v867 = vpop.f32.mrb[0].mxu0
      %868 = vmatprep.mubr.bf16.mxu0 0
      %869 = vmatmul.mubr.bf16.gmra.mrb[0].mxu0 %v665
      %v870 = vpop.f32.mrb[0].mxu0
      %v871 = vadd.f32 0.0, %v870
      %v872 = vpop.f32.mrb[0].mxu0
      %v873 = vpop.f32.mrb[0].mxu0
      %v874 = vadd.f32 0.0, %v873
      %v875 = vpop.f32.mrb[0].mxu0
      %876 = vmatprep.mubr.bf16.mxu0 0
      %877 = vmatmul.mubr.bf16.gmra.mrb[0].mxu0 %v666
      %v878 = vpop.f32.mrb[0].mxu0
      %v879 = vadd.f32 0.0, %v878
      %v880 = vpop.f32.mrb[0].mxu0
      %v881 = vpop.f32.mrb[0].mxu0
      %v882 = vadd.f32 0.0, %v881
      %v883 = vpop.f32.mrb[0].mxu0
      %884 = vmatprep.mubr.bf16.mxu0 0
      %885 = vmatmul.mubr.bf16.gmra.mrb[0].mxu0 %v667
      %v886 = vpop.f32.mrb[0].mxu0
      %v887 = vadd.f32 0.0, %v886
      %v888 = vpop.f32.mrb[0].mxu0
      %v889 = vpop.f32.mrb[0].mxu0
      %v890 = vadd.f32 0.0, %v889
      %v891 = vpop.f32.mrb[0].mxu0
      %892 = vdwg.mxu0
      %v893 = vmul.f32 %v475, %v767
      %v894 = vmul.f32 %v476, %v770
      %v895 = vmul.f32 %v477, %v775
      %v896 = vmul.f32 %v478, %v778
      %v897 = vmul.f32 %v479, %v783
      %v898 = vmul.f32 %v480, %v786
      %v899 = vmul.f32 %v481, %v791
      %v900 = vmul.f32 %v482, %v794
      %v901 = vmul.f32 %v483, %v799
      %v902 = vmul.f32 %v484, %v802
      %v903 = vmul.f32 %v485, %v807
      %v904 = vmul.f32 %v486, %v810
      %v905 = vmul.f32 %v487, %v815
      %v906 = vmul.f32 %v488, %v818
      %v907 = vmul.f32 %v489, %v823
      %v908 = vmul.f32 %v490, %v826
      %v909 = vmul.f32 %v491, %v831
      %v910 = vmul.f32 %v492, %v834
      %v911 = vmul.f32 %v493, %v839
      %v912 = vmul.f32 %v494, %v842
      %v913 = vmul.f32 %v495, %v847
      %v914 = vmul.f32 %v496, %v850
      %v915 = vmul.f32 %v497, %v855
      %v916 = vmul.f32 %v498, %v858
      %v917 = vmul.f32 %v499, %v863
      %v918 = vmul.f32 %v500, %v866
      %v919 = vmul.f32 %v501, %v871
      %v920 = vmul.f32 %v502, %v874
      %v921 = vmul.f32 %v503, %v879
      %v922 = vmul.f32 %v504, %v882
      %v923 = vmul.f32 %v505, %v887
      %v924 = vmul.f32 %v506, %v890
      %v925 = vpack.c.bf16 %v894, %v893
      %v926 = vpack.c.bf16 %v896, %v895
      %v927 = vpack.c.bf16 %v898, %v897
      %v928 = vpack.c.bf16 %v900, %v899
      %v929 = vpack.c.bf16 %v902, %v901
      %v930 = vpack.c.bf16 %v904, %v903
      %v931 = vpack.c.bf16 %v906, %v905
      %v932 = vpack.c.bf16 %v908, %v907
      %v933 = vpack.c.bf16 %v910, %v909
      %v934 = vpack.c.bf16 %v912, %v911
      %v935 = vpack.c.bf16 %v914, %v913
      %v936 = vpack.c.bf16 %v916, %v915
      %v937 = vpack.c.bf16 %v918, %v917
      %v938 = vpack.c.bf16 %v920, %v919
      %v939 = vpack.c.bf16 %v922, %v921
      %v940 = vpack.c.bf16 %v924, %v923
      %v941 = vld [vmem:[#allocation2] sm:$0xff]
      %v942 = vld [vmem:[#allocation2 + $0x8] sm:$0xff]
      %v943 = vld [vmem:[#allocation2 + $0x10] sm:$0xff]
      %v944 = vld [vmem:[#allocation2 + $0x18] sm:$0xff]
      %v945 = vld [vmem:[#allocation2 + $0x20] sm:$0xff]
      %v946 = vld [vmem:[#allocation2 + $0x28] sm:$0xff]
      %v947 = vld [vmem:[#allocation2 + $0x30] sm:$0xff]
      %v948 = vld [vmem:[#allocation2 + $0x38] sm:$0xff]
      %v949 = vld [vmem:[#allocation2 + $0x40] sm:$0xff]
      %v950 = vld [vmem:[#allocation2 + $0x48] sm:$0xff]
      %v951 = vld [vmem:[#allocation2 + $0x50] sm:$0xff]
      %v952 = vld [vmem:[#allocation2 + $0x58] sm:$0xff]
      %v953 = vld [vmem:[#allocation2 + $0x60] sm:$0xff]
      %v954 = vld [vmem:[#allocation2 + $0x68] sm:$0xff]
      %v955 = vld [vmem:[#allocation2 + $0x70] sm:$0xff]
      %v956 = vld [vmem:[#allocation2 + $0x78] sm:$0xff]
      %v957 = vunpack.c.l.s8.bf16 %v267
      %v958 = vunpack.c.h.s8.bf16 %v267
      %v959 = vunpack.c.l.s8.bf16 %v268
      %v960 = vunpack.c.h.s8.bf16 %v268
      %v961 = vunpack.c.l.s8.bf16 %v269
      %v962 = vunpack.c.h.s8.bf16 %v269
      %v963 = vunpack.c.l.s8.bf16 %v270
      %v964 = vunpack.c.h.s8.bf16 %v270
      %v965 = vunpack.c.l.s8.bf16 %v271
      %v966 = vunpack.c.h.s8.bf16 %v271
      %v967 = vunpack.c.l.s8.bf16 %v272
      %v968 = vunpack.c.h.s8.bf16 %v272
      %v969 = vunpack.c.l.s8.bf16 %v273
      %v970 = vunpack.c.h.s8.bf16 %v273
      %v971 = vunpack.c.l.s8.bf16 %v274
      %v972 = vunpack.c.h.s8.bf16 %v274
      %973 = vxpose.xlu0.c.b16.start [1/8] %v957, 128
      %974 = vxpose.xlu0.c.b16.cont [2/8] %v958, 128
      %975 = vxpose.xlu0.c.b16.cont [3/8] %v959, 128
      %976 = vxpose.xlu0.c.b16.cont [4/8] %v960, 128
      %977 = vxpose.xlu0.c.b16.cont [5/8] %v961, 128
      %978 = vxpose.xlu0.c.b16.cont [6/8] %v962, 128
      %979 = vxpose.xlu0.c.b16.cont [7/8] %v963, 128
      %980 = vxpose.xlu0.c.b16.end [8/8] %v964, 128
      %v981 = vpop.trf.xlu0
      %v982 = vpop.trf.xlu0
      %v983 = vpop.trf.xlu0
      %v984 = vpop.trf.xlu0
      %v985 = vpop.trf.xlu0
      %v986 = vpop.trf.xlu0
      %v987 = vpop.trf.xlu0
      %v988 = vpop.trf.xlu0
      %989 = vxpose.xlu0.c.b16.start [1/8] %v965, 128
      %990 = vxpose.xlu0.c.b16.cont [2/8] %v966, 128
      %991 = vxpose.xlu0.c.b16.cont [3/8] %v967, 128
      %992 = vxpose.xlu0.c.b16.cont [4/8] %v968, 128
      %993 = vxpose.xlu0.c.b16.cont [5/8] %v969, 128
      %994 = vxpose.xlu0.c.b16.cont [6/8] %v970, 128
      %995 = vxpose.xlu0.c.b16.cont [7/8] %v971, 128
      %996 = vxpose.xlu0.c.b16.end [8/8] %v972, 128
      %v997 = vpop.trf.xlu0
      %v998 = vpop.trf.xlu0
      %v999 = vpop.trf.xlu0
      %v1000 = vpop.trf.xlu0
      %v1001 = vpop.trf.xlu0
      %v1002 = vpop.trf.xlu0
      %v1003 = vpop.trf.xlu0
      %v1004 = vpop.trf.xlu0
      %1005 = vmatprep.subr.bf16.mxu0 0
      %1006 = vmatpush1.bf16.msra.mxu0 %v925
      %1007 = vmatprep.subr.bf16.mxu0 0
      %1008 = vmatpush1.bf16.msra.mxu0 %v926
      %1009 = vmatprep.subr.bf16.mxu0 0
      %1010 = vmatpush1.bf16.msra.mxu0 %v927
      %1011 = vmatprep.subr.bf16.mxu0 0
      %1012 = vmatpush1.bf16.msra.mxu0 %v928
      %1013 = vmatprep.subr.bf16.mxu0 0
      %1014 = vmatpush1.bf16.msra.mxu0 %v929
      %1015 = vmatprep.subr.bf16.mxu0 0
      %1016 = vmatpush1.bf16.msra.mxu0 %v930
      %1017 = vmatprep.subr.bf16.mxu0 0
      %1018 = vmatpush1.bf16.msra.mxu0 %v931
      %1019 = vmatprep.subr.bf16.mxu0 0
      %1020 = vmatpush1.bf16.msra.mxu0 %v932
      %1021 = vmatprep.subr.bf16.mxu0 0
      %1022 = vmatpush1.bf16.msra.mxu0 %v933
      %1023 = vmatprep.subr.bf16.mxu0 0
      %1024 = vmatpush1.bf16.msra.mxu0 %v934
      %1025 = vmatprep.subr.bf16.mxu0 0
      %1026 = vmatpush1.bf16.msra.mxu0 %v935
      %1027 = vmatprep.subr.bf16.mxu0 0
      %1028 = vmatpush1.bf16.msra.mxu0 %v936
      %1029 = vmatprep.subr.bf16.mxu0 0
      %1030 = vmatpush1.bf16.msra.mxu0 %v937
      %1031 = vmatprep.subr.bf16.mxu0 0
      %1032 = vmatpush1.bf16.msra.mxu0 %v938
      %1033 = vmatprep.subr.bf16.mxu0 0
      %1034 = vmatpush1.bf16.msra.mxu0 %v939
      %1035 = vmatprep.subr.bf16.mxu0 0
      %1036 = vmatpush1.bf16.msra.mxu0 %v940
      %1037 = vmatprep.mubr.bf16.mxu0 %v997
      %1038 = vmatmul.mubr.bf16.gmra.mrb[0].mxu0 %v981
      %v1039 = vpop.f32.mrb[0].mxu0
      %v1040 = vadd.f32 0.0, %v1039
      %v1041 = vpop.f32.mrb[0].mxu0
      %v1042 = vpop.f32.mrb[0].mxu0
      %v1043 = vadd.f32 0.0, %v1042
      %v1044 = vpop.f32.mrb[0].mxu0
      %1045 = vmatprep.mubr.bf16.mxu0 %v998
      %1046 = vmatmul.mubr.bf16.gmra.mrb[0].mxu0 %v982
      %v1047 = vpop.f32.mrb[0].mxu0
      %v1048 = vadd.f32 0.0, %v1047
      %v1049 = vpop.f32.mrb[0].mxu0
      %v1050 = vpop.f32.mrb[0].mxu0
      %v1051 = vadd.f32 0.0, %v1050
      %v1052 = vpop.f32.mrb[0].mxu0
      %1053 = vmatprep.mubr.bf16.mxu0 %v999
      %1054 = vmatmul.mubr.bf16.gmra.mrb[0].mxu0 %v983
      %v1055 = vpop.f32.mrb[0].mxu0
      %v1056 = vadd.f32 0.0, %v1055
      %v1057 = vpop.f32.mrb[0].mxu0
      %v1058 = vpop.f32.mrb[0].mxu0
      %v1059 = vadd.f32 0.0, %v1058
      %v1060 = vpop.f32.mrb[0].mxu0
      %1061 = vmatprep.mubr.bf16.mxu0 %v1000
      %1062 = vmatmul.mubr.bf16.gmra.mrb[0].mxu0 %v984
      %v1063 = vpop.f32.mrb[0].mxu0
      %v1064 = vadd.f32 0.0, %v1063
      %v1065 = vpop.f32.mrb[0].mxu0
      %v1066 = vpop.f32.mrb[0].mxu0
      %v1067 = vadd.f32 0.0, %v1066
      %v1068 = vpop.f32.mrb[0].mxu0
      %1069 = vmatprep.mubr.bf16.mxu0 %v1001
      %1070 = vmatmul.mubr.bf16.gmra.mrb[0].mxu0 %v985
      %v1071 = vpop.f32.mrb[0].mxu0
      %v1072 = vadd.f32 0.0, %v1071
      %v1073 = vpop.f32.mrb[0].mxu0
      %v1074 = vpop.f32.mrb[0].mxu0
      %v1075 = vadd.f32 0.0, %v1074
      %v1076 = vpop.f32.mrb[0].mxu0
      %1077 = vmatprep.mubr.bf16.mxu0 %v1002
      %1078 = vmatmul.mubr.bf16.gmra.mrb[0].mxu0 %v986
      %v1079 = vpop.f32.mrb[0].mxu0
      %v1080 = vadd.f32 0.0, %v1079
      %v1081 = vpop.f32.mrb[0].mxu0
      %v1082 = vpop.f32.mrb[0].mxu0
      %v1083 = vadd.f32 0.0, %v1082
      %v1084 = vpop.f32.mrb[0].mxu0
      %1085 = vmatprep.mubr.bf16.mxu0 %v1003
      %1086 = vmatmul.mubr.bf16.gmra.mrb[0].mxu0 %v987
      %v1087 = vpop.f32.mrb[0].mxu0
      %v1088 = vadd.f32 0.0, %v1087
      %v1089 = vpop.f32.mrb[0].mxu0
      %v1090 = vpop.f32.mrb[0].mxu0
      %v1091 = vadd.f32 0.0, %v1090
      %v1092 = vpop.f32.mrb[0].mxu0
      %1093 = vmatprep.mubr.bf16.mxu0 %v1004
      %1094 = vmatmul.mubr.bf16.gmra.mrb[0].mxu0 %v988
      %v1095 = vpop.f32.mrb[0].mxu0
      %v1096 = vadd.f32 0.0, %v1095
      %v1097 = vpop.f32.mrb[0].mxu0
      %v1098 = vpop.f32.mrb[0].mxu0
      %v1099 = vadd.f32 0.0, %v1098
      %v1100 = vpop.f32.mrb[0].mxu0
      %1101 = vdwg.mxu0
      %v1102 = vadd.f32 %v941, %v1040
      %v1103 = vadd.f32 %v942, %v1043
      %v1104 = vadd.f32 %v943, %v1048
      %v1105 = vadd.f32 %v944, %v1051
      %v1106 = vadd.f32 %v945, %v1056
      %v1107 = vadd.f32 %v946, %v1059
      %v1108 = vadd.f32 %v947, %v1064
      %v1109 = vadd.f32 %v948, %v1067
      %v1110 = vadd.f32 %v949, %v1072
      %v1111 = vadd.f32 %v950, %v1075
      %v1112 = vadd.f32 %v951, %v1080
      %v1113 = vadd.f32 %v952, %v1083
      %v1114 = vadd.f32 %v953, %v1088
      %v1115 = vadd.f32 %v954, %v1091
      %v1116 = vadd.f32 %v955, %v1096
      %v1117 = vadd.f32 %v956, %v1099
      %1118 = vst [vmem:[#allocation2] sm:$0xff] %v1102
      %1119 = vst [vmem:[#allocation2 + $0x8] sm:$0xff] %v1103
      %1120 = vst [vmem:[#allocation2 + $0x10] sm:$0xff] %v1104
      %1121 = vst [vmem:[#allocation2 + $0x18] sm:$0xff] %v1105
      %1122 = vst [vmem:[#allocation2 + $0x20] sm:$0xff] %v1106
      %1123 = vst [vmem:[#allocation2 + $0x28] sm:$0xff] %v1107
      %1124 = vst [vmem:[#allocation2 + $0x30] sm:$0xff] %v1108
      %1125 = vst [vmem:[#allocation2 + $0x38] sm:$0xff] %v1109
      %1126 = vst [vmem:[#allocation2 + $0x40] sm:$0xff] %v1110
      %1127 = vst [vmem:[#allocation2 + $0x48] sm:$0xff] %v1111
      %1128 = vst [vmem:[#allocation2 + $0x50] sm:$0xff] %v1112
      %1129 = vst [vmem:[#allocation2 + $0x58] sm:$0xff] %v1113
      %1130 = vst [vmem:[#allocation2 + $0x60] sm:$0xff] %v1114
      %1131 = vst [vmem:[#allocation2 + $0x68] sm:$0xff] %v1115
      %1132 = vst [vmem:[#allocation2 + $0x70] sm:$0xff] %v1116
      %1133 = vst [vmem:[#allocation2 + $0x78] sm:$0xff] %v1117
      %p1134 = scmp.eq.s32.totalorder %s17, 2
      // Predicated region
      $region37: #{hypergraph_conv.2} parent=31 // pred_check
        %p1135 = pneg %p1134
      $region38: #{hypergraph_conv.2} parent=31 // pred_check_branch
        %1137 = sbr.rel (%p1135) target = $region40
      $region39: #{hypergraph_conv.2} parent=31 // pred_region
        %v1138 = vld [vmem:[#allocation3] sm:$0x1]
        %v1139 = vadd.f32 %v1138, 1e-05
        %v1140 = vrcp.pop %v1139
        %1141 = vst [vmem:[%s4] sm:$0x1] %v1140
        %v1142 = vld [vmem:[#allocation2] sm:$0xff]
        %v1143 = vld [vmem:[#allocation2 + $0x8] sm:$0xff]
        %v1144 = vld [vmem:[#allocation2 + $0x10] sm:$0xff]
        %v1145 = vld [vmem:[#allocation2 + $0x18] sm:$0xff]
        %v1146 = vld [vmem:[#allocation2 + $0x20] sm:$0xff]
        %v1147 = vld [vmem:[#allocation2 + $0x28] sm:$0xff]
        %v1148 = vld [vmem:[#allocation2 + $0x30] sm:$0xff]
        %v1149 = vld [vmem:[#allocation2 + $0x38] sm:$0xff]
        %v1150 = vld [vmem:[#allocation2 + $0x40] sm:$0xff]
        %v1151 = vld [vmem:[#allocation2 + $0x48] sm:$0xff]
        %v1152 = vld [vmem:[#allocation2 + $0x50] sm:$0xff]
        %v1153 = vld [vmem:[#allocation2 + $0x58] sm:$0xff]
        %v1154 = vld [vmem:[#allocation2 + $0x60] sm:$0xff]
        %v1155 = vld [vmem:[#allocation2 + $0x68] sm:$0xff]
        %v1156 = vld [vmem:[#allocation2 + $0x70] sm:$0xff]
        %v1157 = vld [vmem:[#allocation2 + $0x78] sm:$0xff]
        %v1158 = vpack.c.bf16 %v1143, %v1142
        %v1159 = vpack.c.bf16 %v1145, %v1144
        %v1160 = vpack.c.bf16 %v1147, %v1146
        %v1161 = vpack.c.bf16 %v1149, %v1148
        %v1162 = vpack.c.bf16 %v1151, %v1150
        %v1163 = vpack.c.bf16 %v1153, %v1152
        %v1164 = vpack.c.bf16 %v1155, %v1154
        %v1165 = vpack.c.bf16 %v1157, %v1156
        %v1174 = vunpack.c.l.b16 %v1158
        %v1175 = vunpack.c.h.b16 %v1158
        %v1176 = vunpack.c.l.b16 %v1159
        %v1177 = vunpack.c.h.b16 %v1159
        %v1178 = vunpack.c.l.b16 %v1160
        %v1179 = vunpack.c.h.b16 %v1160
        %v1180 = vunpack.c.l.b16 %v1161
        %v1181 = vunpack.c.h.b16 %v1161
        %v1182 = vunpack.c.l.b16 %v1162
        %v1183 = vunpack.c.h.b16 %v1162
        %v1184 = vunpack.c.l.b16 %v1163
        %v1185 = vunpack.c.h.b16 %v1163
        %v1186 = vunpack.c.l.b16 %v1164
        %v1187 = vunpack.c.h.b16 %v1164
        %v1188 = vunpack.c.l.b16 %v1165
        %v1189 = vunpack.c.h.b16 %v1165
        %v1190 = vpack.c.b16 %v1174, %v1174
        %v1191 = vpack.c.b16 %v1175, %v1175
        %v1192 = vpack.c.b16 %v1176, %v1176
        %v1193 = vpack.c.b16 %v1177, %v1177
        %v1194 = vpack.c.b16 %v1178, %v1178
        %v1195 = vpack.c.b16 %v1179, %v1179
        %v1196 = vpack.c.b16 %v1180, %v1180
        %v1197 = vpack.c.b16 %v1181, %v1181
        %v1198 = vpack.c.b16 %v1182, %v1182
        %v1199 = vpack.c.b16 %v1183, %v1183
        %v1200 = vpack.c.b16 %v1184, %v1184
        %v1201 = vpack.c.b16 %v1185, %v1185
        %v1202 = vpack.c.b16 %v1186, %v1186
        %v1203 = vpack.c.b16 %v1187, %v1187
        %v1204 = vpack.c.b16 %v1188, %v1188
        %v1205 = vpack.c.b16 %v1189, %v1189
        %1222 = vst [vmem:[%s3] sm:$0xf] %v1190
        %1223 = vst [vmem:[%s3 + $0x4] sm:$0xf] %v1191
        %1224 = vst [vmem:[%s3 + $0x8] sm:$0xf] %v1192
        %1225 = vst [vmem:[%s3 + $0xc] sm:$0xf] %v1193
        %1226 = vst [vmem:[%s3 + $0x10] sm:$0xf] %v1194
        %1227 = vst [vmem:[%s3 + $0x14] sm:$0xf] %v1195
        %1228 = vst [vmem:[%s3 + $0x18] sm:$0xf] %v1196
        %1229 = vst [vmem:[%s3 + $0x1c] sm:$0xf] %v1197
        %1230 = vst [vmem:[%s3 + $0x20] sm:$0xf] %v1198
        %1231 = vst [vmem:[%s3 + $0x24] sm:$0xf] %v1199
        %1232 = vst [vmem:[%s3 + $0x28] sm:$0xf] %v1200
        %1233 = vst [vmem:[%s3 + $0x2c] sm:$0xf] %v1201
        %1234 = vst [vmem:[%s3 + $0x30] sm:$0xf] %v1202
        %1235 = vst [vmem:[%s3 + $0x34] sm:$0xf] %v1203
        %1236 = vst [vmem:[%s3 + $0x38] sm:$0xf] %v1204
        %1237 = vst [vmem:[%s3 + $0x3c] sm:$0xf] %v1205
      $region40: #{hypergraph_conv.2} parent=31 // pred_fallthru
        _
      %s1238 = smul.u32 32, %s17
      %p1239 = scmp.lt.s32.totalorder %s1238, 95
      %s1240 = scalar_select %p1239, %s1238, 95
      %s1241 = smul.addr %s1240, 8
      %s1242 = scalar_lea.vmem %s5, %s1241
      // Predicated region
      $region41: #{hypergraph_conv.2} parent=31 // pred_check
        %p1243 = pneg %p103
      $region42: #{hypergraph_conv.2} parent=31 // pred_check_branch
        %1245 = sbr.rel (%p1243) target = $region44
      $region43: #{hypergraph_conv.2} parent=31 // pred_region
        _
      $region44: #{hypergraph_conv.2} parent=31 // pred_fallthru
        _
      // Predicated region
      $region45: #{hypergraph_conv.2} parent=31 // pred_check
        %p1246 = pneg %p124
      $region46: #{hypergraph_conv.2} parent=31 // pred_check_branch
        %1248 = sbr.rel (%p1246) target = $region48
      $region47: #{hypergraph_conv.2} parent=31 // pred_region
        _
      $region48: #{hypergraph_conv.2} parent=31 // pred_fallthru
        _
      // Predicated region
      $region49: #{hypergraph_conv.2} parent=31 // pred_check
        %p1249 = pneg %p150
      $region50: #{hypergraph_conv.2} parent=31 // pred_check_branch
        %1251 = sbr.rel (%p1249) target = $region52
      $region51: #{hypergraph_conv.2} parent=31 // pred_region
        %s1252 = smul.u32 32, %s17
      $region52: #{hypergraph_conv.2} parent=31 // pred_fallthru
        _
      // Predicated region
      $region53: #{hypergraph_conv.2} parent=31 // pred_check
        %p1253 = pneg %p103
      $region54: #{hypergraph_conv.2} parent=31 // pred_check_branch
        %1255 = sbr.rel (%p1253) target = $region56
      $region55: #{hypergraph_conv.2} parent=31 // pred_region
        _
      $region56: #{hypergraph_conv.2} parent=31 // pred_fallthru
        _
      // Predicated region
      $region57: #{hypergraph_conv.2} parent=31 // pred_check
        %p1256 = pneg %p124
      $region58: #{hypergraph_conv.2} parent=31 // pred_check_branch
        %1258 = sbr.rel (%p1256) target = $region60
      $region59: #{hypergraph_conv.2} parent=31 // pred_region
        _
      $region60: #{hypergraph_conv.2} parent=31 // pred_fallthru
        _
    $region32: #{hypergraph_conv.2} parent=5 // pred_fallthru
      _
    %p1259 = scmp.le.s32.totalorder 2, %s12
    // Predicated region
    $region61: #{hypergraph_conv.2} parent=5 // pred_check
      %p1260 = pneg %p1259
    $region62: #{hypergraph_conv.2} parent=5 // pred_check_branch
      %1262 = sbr.rel (%p1260) target = $region64
    $region63: #{hypergraph_conv.2} parent=5 // pred_region
      %s1263 = ssub.s32 %s12, 2
      // Predicated region
      $region65: #{hypergraph_conv.2} parent=63 // pred_check
        %p1264 = pneg %p156
      $region66: #{hypergraph_conv.2} parent=63 // pred_check_branch
        %1266 = sbr.rel (%p1264) target = $region68
      $region67: #{hypergraph_conv.2} parent=63 // pred_region
        %s1267 = smul.u32 32, %s18
        %p1268 = scmp.lt.s32.totalorder %s1267, 95
        %s1269 = scalar_select %p1268, %s1267, 95
        %s1270 = smul.addr %s1269, 8
        %s1271 = scalar_lea.vmem %s5, %s1270
      $region68: #{hypergraph_conv.2} parent=63 // pred_fallthru
        _
    $region64: #{hypergraph_conv.2} parent=5 // pred_fallthru
      _
  $region6: #{hypergraph_conv.2} parent=0 // loop_footer
    %s16 = sadd.s32 1, %s12
  $region7: #{hypergraph_conv.2} parent=0 // loop_footer_branch
    %11 = sbr.rel target = $region3
  $region8: #{hypergraph_conv.2} parent=0 // loop_exit
    _

</llo_original>
